<compile_context>
chip_gen: v7x
topology: tpu7x:2x2x1
jax: 0.10.0
libtpu: 0.0.40
codegen_flags: <defaults>
</compile_context>

<pallas_src>
import jax
import jax.numpy as jnp
from jax.experimental import pallas as pl
from jax.experimental.pallas import tpu as pltpu

EPS = 1e-5
LANE = 128


def _round_up(n, m):
    return ((n + m - 1) // m) * m


def _ln_relu(h, gamma, beta):
    """Single-pass LayerNorm statistics (f32) followed by ReLU."""
    n = h.shape[-1]
    inv_n = 1.0 / n
    s1 = jnp.sum(h, axis=-1, keepdims=True)
    s2 = jnp.sum(h * h, axis=-1, keepdims=True)
    mean = s1 * inv_n
    var = s2 * inv_n - mean * mean
    y = (h - mean) * jax.lax.rsqrt(var + EPS) * gamma + beta
    return jnp.maximum(y, 0.0)


def vqa_kernel(x_ref,
               w1_ref, b1_ref, g1_ref, be1_ref,
               w2_ref, b2_ref, g2_ref, be2_ref,
               w3_ref, b3_ref,
               out_ref):
    x = x_ref[...]                                     # bf16 [tile_b, in]

    # block1: Linear -> LayerNorm -> ReLU -> (Dropout = identity)
    h = jnp.dot(x, w1_ref[...], preferred_element_type=jnp.float32) + b1_ref[...]
    h = _ln_relu(h, g1_ref[...], be1_ref[...])

    # block2: Linear -> LayerNorm -> ReLU -> (Dropout = identity)
    h2 = jnp.dot(h.astype(jnp.bfloat16), w2_ref[...],
                 preferred_element_type=jnp.float32) + b2_ref[...]
    h2 = _ln_relu(h2, g2_ref[...], be2_ref[...])

    # classifier: lane-dense (padded) output; padded columns are exactly zero.
    out_ref[...] = (jnp.dot(h2.astype(jnp.bfloat16), w3_ref[...],
                            preferred_element_type=jnp.float32)
                    + b3_ref[...]).astype(out_ref.dtype)


def prepare_params(params):
    """One-time preprocessing: transpose weights to [in, out], cast matmul
    operands to bf16, pad classifier to a 128-lane multiple, reshape 1-D
    params to row vectors. Keep LN/bias params in f32."""
    (w1, b1, g1, be1, w2, b2, g2, be2, w3, b3) = params
    out_dim = w3.shape[0]
    out_pad = _round_up(out_dim, LANE)

    w1_t = w1.T.astype(jnp.bfloat16)                                  # [in, H]
    w2_t = w2.T.astype(jnp.bfloat16)                                  # [H, 2H]
    w3_t = jnp.zeros((w3.shape[1], out_pad), jnp.float32)
    w3_t = w3_t.at[:, :out_dim].set(w3.T).astype(jnp.bfloat16)        # [2H, out_pad]
    b3_p = jnp.zeros((1, out_pad), jnp.float32).at[0, :out_dim].set(b3)

    prepped = (w1_t,
               b1[None, :].astype(jnp.float32),
               g1[None, :].astype(jnp.float32),
               be1[None, :].astype(jnp.float32),
               w2_t,
               b2[None, :].astype(jnp.float32),
               g2[None, :].astype(jnp.float32),
               be2[None, :].astype(jnp.float32),
               w3_t,
               b3_p)
    return prepped, out_dim


def _pick_tile_b(B):
    # Largest batch tile that is a multiple of 8 (f32 sublanes), <= 512,
    # divides B, and leaves >=2 grid steps for pipelining / v7x megacore.
    for cand in (512, 256, 128, 64, 32, 16, 8):
        if cand < B and B % cand == 0:
            return cand
    return B


def vqa_forward(x, prepped, out_dim, *, tile_b=None):
    B, input_dim = x.shape
    (w1_t, b1r, g1r, be1r, w2_t, b2r, g2r, be2r, w3_t, b3r) = prepped
    H = w1_t.shape[1]
    H2 = w2_t.shape[1]
    out_pad = w3_t.shape[1]

    if tile_b is None:
        tile_b = _pick_tile_b(B)
    assert B % tile_b == 0

    x_bf16 = x.astype(jnp.bfloat16)

    def full_spec(shape):
        # Grid-invariant parameter: same full block at every grid step.
        return pl.BlockSpec(shape, lambda i: (0,) * len(shape))

    grid = (B // tile_b,)
    in_specs = [
        pl.BlockSpec((tile_b, input_dim), lambda i: (i, 0)),          # x tile
        full_spec(w1_t.shape), full_spec(b1r.shape),
        full_spec(g1r.shape), full_spec(be1r.shape),
        full_spec(w2_t.shape), full_spec(b2r.shape),
        full_spec(g2r.shape), full_spec(be2r.shape),
        full_spec(w3_t.shape), full_spec(b3r.shape),
    ]
    out_spec = pl.BlockSpec((tile_b, out_pad), lambda i: (i, 0))

    flops = 2 * B * (input_dim * H + H * H2 + H2 * out_pad)
    bytes_accessed = (
        x_bf16.size * 2
        + (w1_t.size + w2_t.size + w3_t.size) * 2
        + (b1r.size + g1r.size + be1r.size
           + b2r.size + g2r.size + be2r.size + b3r.size) * 4
        + B * out_pad * 4
    )
    cost = pl.CostEstimate(flops=flops, transcendentals=2 * B,
                           bytes_accessed=bytes_accessed)

    out_padded = pl.pallas_call(
        vqa_kernel,
        out_shape=jax.ShapeDtypeStruct((B, out_pad), jnp.float32),
        grid_spec=pltpu.PrefetchScalarGridSpec(
            num_scalar_prefetch=0,
            grid=grid,
            in_specs=in_specs,
            out_specs=out_spec,
        ),
        compiler_params=pltpu.CompilerParams(
            dimension_semantics=("parallel",),
            vmem_limit_bytes=32 * 1024 * 1024,
        ),
        cost_estimate=cost,
    )(x_bf16, *prepped)

    return out_padded[:, :out_dim]


def init_params(key, input_dim, hidden_dim, output_dim):
    ks = jax.random.split(key, 6)
    # Deterministic synthetic init (shapes follow PyTorch conventions: [out, in]).
    w1 = jax.random.normal(ks[0], (hidden_dim, input_dim), jnp.float32) * 0.1
    b1 = jax.random.normal(ks[1], (hidden_dim,), jnp.float32) * 0.1
    g1 = jnp.ones((hidden_dim,), jnp.float32)
    be1 = jnp.zeros((hidden_dim,), jnp.float32)

    w2 = jax.random.normal(ks[2], (2 * hidden_dim, hidden_dim), jnp.float32) * 0.1
    b2 = jax.random.normal(ks[3], (2 * hidden_dim,), jnp.float32) * 0.1
    g2 = jnp.ones((2 * hidden_dim,), jnp.float32)
    be2 = jnp.zeros((2 * hidden_dim,), jnp.float32)

    w3 = jax.random.normal(ks[4], (output_dim, 2 * hidden_dim), jnp.float32) * 0.1
    b3 = jax.random.normal(ks[5], (output_dim,), jnp.float32) * 0.1
    return (w1, b1, g1, be1, w2, b2, g2, be2, w3, b3)


def vqa_reference(x, params):
    (w1, b1, g1, be1, w2, b2, g2, be2, w3, b3) = params

    def ln(h, g, be):
        mu = jnp.mean(h, axis=-1, keepdims=True)
        var = jnp.mean((h - mu) ** 2, axis=-1, keepdims=True)
        return (h - mu) / jnp.sqrt(var + EPS) * g + be

    h = jnp.maximum(ln(x @ w1.T + b1, g1, be1), 0.0)
    h = jnp.maximum(ln(h @ w2.T + b2, g2, be2), 0.0)
    return h @ w3.T + b3


if __name__ == "__main__":
    # MXU/lane-friendly small sizes: in=128, H=128 (2H=256), out=10 (padded to 128).
    B, input_dim, hidden_dim, output_dim = 256, 128, 128, 10

    key = jax.random.PRNGKey(0)
    kx, kp = jax.random.split(key)
    x = jax.random.normal(kx, (B, input_dim), jnp.float32)
    params = init_params(kp, input_dim, hidden_dim, output_dim)

    # One-time parameter preprocessing (transpose / pad / cast) outside hot path.
    prepped, out_dim = prepare_params(params)

    out = vqa_forward(x, prepped, out_dim)          # grid = (2,), tile_b = 128
    out = jax.block_until_ready(out)

    ref = vqa_reference(x, params)                  # f32 reference
    assert out.shape == (B, output_dim)
    # bf16 matmul operands with f32 accumulation -> loosened tolerance vs f32 ref.
    assert jnp.allclose(out, ref, atol=1e-1, rtol=1e-1), "mismatch vs reference"

    print("KERNEL_OK")
</pallas_src>

<mosaic_0001>
module attributes {stable_mosaic.version = 11 : i64} {
  func.func @vqa_kernel(%arg0: i32, %arg1: memref<128x128xbf16, #tpu.memory_space<vmem>>, %arg2: memref<128x128xbf16, #tpu.memory_space<vmem>>, %arg3: memref<1x128xf32, #tpu.memory_space<vmem>>, %arg4: memref<1x128xf32, #tpu.memory_space<vmem>>, %arg5: memref<1x128xf32, #tpu.memory_space<vmem>>, %arg6: memref<128x256xbf16, #tpu.memory_space<vmem>>, %arg7: memref<1x256xf32, #tpu.memory_space<vmem>>, %arg8: memref<1x256xf32, #tpu.memory_space<vmem>>, %arg9: memref<1x256xf32, #tpu.memory_space<vmem>>, %arg10: memref<256x128xbf16, #tpu.memory_space<vmem>>, %arg11: memref<1x128xf32, #tpu.memory_space<vmem>>, %arg12: memref<128x128xf32, #tpu.memory_space<vmem>>) attributes {dimension_semantics = [#tpu.dimension_semantics<parallel>], iteration_bounds = array<i64: 2>, scalar_prefetch = 0 : i64, scratch_operands = 0 : i64, tpu.core_type = #tpu.core_type<tc>, window_params = [{transform_indices = @transform_0, window_bounds = array<i64: 128, 128>}, {pipeline_mode = #tpu.pipeline_mode<synchronous>, transform_indices = @transform_1, window_bounds = array<i64: 128, 128>}, {pipeline_mode = #tpu.pipeline_mode<synchronous>, transform_indices = @transform_2, window_bounds = array<i64: 1, 128>}, {pipeline_mode = #tpu.pipeline_mode<synchronous>, transform_indices = @transform_3, window_bounds = array<i64: 1, 128>}, {pipeline_mode = #tpu.pipeline_mode<synchronous>, transform_indices = @transform_4, window_bounds = array<i64: 1, 128>}, {pipeline_mode = #tpu.pipeline_mode<synchronous>, transform_indices = @transform_5, window_bounds = array<i64: 128, 256>}, {pipeline_mode = #tpu.pipeline_mode<synchronous>, transform_indices = @transform_6, window_bounds = array<i64: 1, 256>}, {pipeline_mode = #tpu.pipeline_mode<synchronous>, transform_indices = @transform_7, window_bounds = array<i64: 1, 256>}, {pipeline_mode = #tpu.pipeline_mode<synchronous>, transform_indices = @transform_8, window_bounds = array<i64: 1, 256>}, {pipeline_mode = #tpu.pipeline_mode<synchronous>, transform_indices = @transform_9, window_bounds = array<i64: 256, 128>}, {pipeline_mode = #tpu.pipeline_mode<synchronous>, transform_indices = @transform_10, window_bounds = array<i64: 1, 128>}, {transform_indices = @transform_11, window_bounds = array<i64: 128, 128>}]} {
    %c0 = arith.constant 0 : index
    %c0_0 = arith.constant 0 : index
    %0 = vector.load %arg1[%c0, %c0_0] : memref<128x128xbf16, #tpu.memory_space<vmem>>, vector<128x128xbf16>
    %c0_1 = arith.constant 0 : index
    %c0_2 = arith.constant 0 : index
    %1 = vector.load %arg2[%c0_1, %c0_2] : memref<128x128xbf16, #tpu.memory_space<vmem>>, vector<128x128xbf16>
    %cst = arith.constant dense<0.000000e+00> : vector<128x128xf32>
    %2 = tpu.matmul %0, %1, %cst {dimension_numbers = #tpu.dot_dimension_numbers<[1], [0], [0], [1], [0, 0, 1, 1], [], []>} : vector<128x128xbf16>, vector<128x128xbf16>, vector<128x128xf32> -> vector<128x128xf32>
    %c0_3 = arith.constant 0 : index
    %c0_4 = arith.constant 0 : index
    %3 = vector.load %arg3[%c0_3, %c0_4] : memref<1x128xf32, #tpu.memory_space<vmem>>, vector<1x128xf32>
    %4 = vector.broadcast %3 : vector<1x128xf32> to vector<128x128xf32>
    %5 = arith.addf %2, %4 : vector<128x128xf32>
    %c0_5 = arith.constant 0 : index
    %c0_6 = arith.constant 0 : index
    %6 = vector.load %arg4[%c0_5, %c0_6] : memref<1x128xf32, #tpu.memory_space<vmem>>, vector<1x128xf32>
    %c0_7 = arith.constant 0 : index
    %c0_8 = arith.constant 0 : index
    %7 = vector.load %arg5[%c0_7, %c0_8] : memref<1x128xf32, #tpu.memory_space<vmem>>, vector<1x128xf32>
    %cst_9 = arith.constant dense<0.000000e+00> : vector<128xf32>
    %8 = vector.multi_reduction <add>, %5, %cst_9 [1] : vector<128x128xf32> to vector<128xf32>
    %9 = vector.shape_cast %8 : vector<128xf32> to vector<128x1xf32>
    %10 = arith.mulf %5, %5 : vector<128x128xf32>
    %cst_10 = arith.constant dense<0.000000e+00> : vector<128xf32>
    %11 = vector.multi_reduction <add>, %10, %cst_10 [1] : vector<128x128xf32> to vector<128xf32>
    %12 = vector.shape_cast %11 : vector<128xf32> to vector<128x1xf32>
    %cst_11 = arith.constant 7.812500e-03 : f32
    %13 = vector.broadcast %cst_11 : f32 to vector<128x1xf32>
    %14 = arith.mulf %9, %13 : vector<128x1xf32>
    %cst_12 = arith.constant 7.812500e-03 : f32
    %15 = vector.broadcast %cst_12 : f32 to vector<128x1xf32>
    %16 = arith.mulf %12, %15 : vector<128x1xf32>
    %17 = arith.mulf %14, %14 : vector<128x1xf32>
    %18 = arith.subf %16, %17 : vector<128x1xf32>
    %19 = vector.broadcast %14 : vector<128x1xf32> to vector<128x128xf32>
    %20 = arith.subf %5, %19 : vector<128x128xf32>
    %cst_13 = arith.constant 9.99999974E-6 : f32
    %21 = vector.broadcast %cst_13 : f32 to vector<128x1xf32>
    %22 = arith.addf %18, %21 : vector<128x1xf32>
    %23 = math.rsqrt %22 : vector<128x1xf32>
    %24 = vector.broadcast %23 : vector<128x1xf32> to vector<128x128xf32>
    %25 = arith.mulf %20, %24 : vector<128x128xf32>
    %26 = vector.broadcast %6 : vector<1x128xf32> to vector<128x128xf32>
    %27 = arith.mulf %25, %26 : vector<128x128xf32>
    %28 = vector.broadcast %7 : vector<1x128xf32> to vector<128x128xf32>
    %29 = arith.addf %27, %28 : vector<128x128xf32>
    %cst_14 = arith.constant 0.000000e+00 : f32
    %30 = vector.broadcast %cst_14 : f32 to vector<128x128xf32>
    %31 = arith.maximumf %29, %30 : vector<128x128xf32>
    %32 = arith.truncf %31 : vector<128x128xf32> to vector<128x128xbf16>
    %c0_15 = arith.constant 0 : index
    %c0_16 = arith.constant 0 : index
    %33 = vector.load %arg6[%c0_15, %c0_16] : memref<128x256xbf16, #tpu.memory_space<vmem>>, vector<128x256xbf16>
    %cst_17 = arith.constant dense<0.000000e+00> : vector<128x256xf32>
    %34 = tpu.matmul %32, %33, %cst_17 {dimension_numbers = #tpu.dot_dimension_numbers<[1], [0], [0], [1], [0, 0, 1, 1], [], []>} : vector<128x128xbf16>, vector<128x256xbf16>, vector<128x256xf32> -> vector<128x256xf32>
    %c0_18 = arith.constant 0 : index
    %c0_19 = arith.constant 0 : index
    %35 = vector.load %arg7[%c0_18, %c0_19] : memref<1x256xf32, #tpu.memory_space<vmem>>, vector<1x256xf32>
    %36 = vector.broadcast %35 : vector<1x256xf32> to vector<128x256xf32>
    %37 = arith.addf %34, %36 : vector<128x256xf32>
    %c0_20 = arith.constant 0 : index
    %c0_21 = arith.constant 0 : index
    %38 = vector.load %arg8[%c0_20, %c0_21] : memref<1x256xf32, #tpu.memory_space<vmem>>, vector<1x256xf32>
    %c0_22 = arith.constant 0 : index
    %c0_23 = arith.constant 0 : index
    %39 = vector.load %arg9[%c0_22, %c0_23] : memref<1x256xf32, #tpu.memory_space<vmem>>, vector<1x256xf32>
    %cst_24 = arith.constant dense<0.000000e+00> : vector<128xf32>
    %40 = vector.multi_reduction <add>, %37, %cst_24 [1] : vector<128x256xf32> to vector<128xf32>
    %41 = vector.shape_cast %40 : vector<128xf32> to vector<128x1xf32>
    %42 = arith.mulf %37, %37 : vector<128x256xf32>
    %cst_25 = arith.constant dense<0.000000e+00> : vector<128xf32>
    %43 = vector.multi_reduction <add>, %42, %cst_25 [1] : vector<128x256xf32> to vector<128xf32>
    %44 = vector.shape_cast %43 : vector<128xf32> to vector<128x1xf32>
    %cst_26 = arith.constant 3.906250e-03 : f32
    %45 = vector.broadcast %cst_26 : f32 to vector<128x1xf32>
    %46 = arith.mulf %41, %45 : vector<128x1xf32>
    %cst_27 = arith.constant 3.906250e-03 : f32
    %47 = vector.broadcast %cst_27 : f32 to vector<128x1xf32>
    %48 = arith.mulf %44, %47 : vector<128x1xf32>
    %49 = arith.mulf %46, %46 : vector<128x1xf32>
    %50 = arith.subf %48, %49 : vector<128x1xf32>
    %51 = vector.broadcast %46 : vector<128x1xf32> to vector<128x256xf32>
    %52 = arith.subf %37, %51 : vector<128x256xf32>
    %cst_28 = arith.constant 9.99999974E-6 : f32
    %53 = vector.broadcast %cst_28 : f32 to vector<128x1xf32>
    %54 = arith.addf %50, %53 : vector<128x1xf32>
    %55 = math.rsqrt %54 : vector<128x1xf32>
    %56 = vector.broadcast %55 : vector<128x1xf32> to vector<128x256xf32>
    %57 = arith.mulf %52, %56 : vector<128x256xf32>
    %58 = vector.broadcast %38 : vector<1x256xf32> to vector<128x256xf32>
    %59 = arith.mulf %57, %58 : vector<128x256xf32>
    %60 = vector.broadcast %39 : vector<1x256xf32> to vector<128x256xf32>
    %61 = arith.addf %59, %60 : vector<128x256xf32>
    %cst_29 = arith.constant 0.000000e+00 : f32
    %62 = vector.broadcast %cst_29 : f32 to vector<128x256xf32>
    %63 = arith.maximumf %61, %62 : vector<128x256xf32>
    %64 = arith.truncf %63 : vector<128x256xf32> to vector<128x256xbf16>
    %c0_30 = arith.constant 0 : index
    %c0_31 = arith.constant 0 : index
    %65 = vector.load %arg10[%c0_30, %c0_31] : memref<256x128xbf16, #tpu.memory_space<vmem>>, vector<256x128xbf16>
    %cst_32 = arith.constant dense<0.000000e+00> : vector<128x128xf32>
    %66 = tpu.matmul %64, %65, %cst_32 {dimension_numbers = #tpu.dot_dimension_numbers<[1], [0], [0], [1], [0, 0, 1, 1], [], []>} : vector<128x256xbf16>, vector<256x128xbf16>, vector<128x128xf32> -> vector<128x128xf32>
    %c0_33 = arith.constant 0 : index
    %c0_34 = arith.constant 0 : index
    %67 = vector.load %arg11[%c0_33, %c0_34] : memref<1x128xf32, #tpu.memory_space<vmem>>, vector<1x128xf32>
    %68 = vector.broadcast %67 : vector<1x128xf32> to vector<128x128xf32>
    %69 = arith.addf %66, %68 : vector<128x128xf32>
    %c0_35 = arith.constant 0 : index
    %c0_36 = arith.constant 0 : index
    %70 = vector.load %arg12[%c0_35, %c0_36] : memref<128x128xf32, #tpu.memory_space<vmem>>, vector<128x128xf32>
    tpu.vector_store %arg12[%c0_35, %c0_36], %69 {strides = array<i32>} : memref<128x128xf32, #tpu.memory_space<vmem>>, vector<128x128xf32>,
    return
  }
  func.func @transform_0(%arg0: i32) -> (i32, i32) {
    %c0_i32 = arith.constant 0 : i32
    %c0_i32_0 = arith.constant 0 : i32
    return %arg0, %c0_i32 : i32, i32
  }
  func.func @transform_1(%arg0: i32) -> (i32, i32) {
    %c0_i32 = arith.constant 0 : i32
    %c0_i32_0 = arith.constant 0 : i32
    %c0_i32_1 = arith.constant 0 : i32
    return %c0_i32, %c0_i32_0 : i32, i32
  }
  func.func @transform_2(%arg0: i32) -> (i32, i32) {
    %c0_i32 = arith.constant 0 : i32
    %c0_i32_0 = arith.constant 0 : i32
    %c0_i32_1 = arith.constant 0 : i32
    return %c0_i32, %c0_i32_0 : i32, i32
  }
  func.func @transform_3(%arg0: i32) -> (i32, i32) {
    %c0_i32 = arith.constant 0 : i32
    %c0_i32_0 = arith.constant 0 : i32
    %c0_i32_1 = arith.constant 0 : i32
    return %c0_i32, %c0_i32_0 : i32, i32
  }
  func.func @transform_4(%arg0: i32) -> (i32, i32) {
    %c0_i32 = arith.constant 0 : i32
    %c0_i32_0 = arith.constant 0 : i32
    %c0_i32_1 = arith.constant 0 : i32
    return %c0_i32, %c0_i32_0 : i32, i32
  }
  func.func @transform_5(%arg0: i32) -> (i32, i32) {
    %c0_i32 = arith.constant 0 : i32
    %c0_i32_0 = arith.constant 0 : i32
    %c0_i32_1 = arith.constant 0 : i32
    return %c0_i32, %c0_i32_0 : i32, i32
  }
  func.func @transform_6(%arg0: i32) -> (i32, i32) {
    %c0_i32 = arith.constant 0 : i32
    %c0_i32_0 = arith.constant 0 : i32
    %c0_i32_1 = arith.constant 0 : i32
    return %c0_i32, %c0_i32_0 : i32, i32
  }
  func.func @transform_7(%arg0: i32) -> (i32, i32) {
    %c0_i32 = arith.constant 0 : i32
    %c0_i32_0 = arith.constant 0 : i32
    %c0_i32_1 = arith.constant 0 : i32
    return %c0_i32, %c0_i32_0 : i32, i32
  }
  func.func @transform_8(%arg0: i32) -> (i32, i32) {
    %c0_i32 = arith.constant 0 : i32
    %c0_i32_0 = arith.constant 0 : i32
    %c0_i32_1 = arith.constant 0 : i32
    return %c0_i32, %c0_i32_0 : i32, i32
  }
  func.func @transform_9(%arg0: i32) -> (i32, i32) {
    %c0_i32 = arith.constant 0 : i32
    %c0_i32_0 = arith.constant 0 : i32
    %c0_i32_1 = arith.constant 0 : i32
    return %c0_i32, %c0_i32_0 : i32, i32
  }
  func.func @transform_10(%arg0: i32) -> (i32, i32) {
    %c0_i32 = arith.constant 0 : i32
    %c0_i32_0 = arith.constant 0 : i32
    %c0_i32_1 = arith.constant 0 : i32
    return %c0_i32, %c0_i32_0 : i32, i32
  }
  func.func @transform_11(%arg0: i32) -> (i32, i32) {
    %c0_i32 = arith.constant 0 : i32
    %c0_i32_0 = arith.constant 0 : i32
    return %arg0, %c0_i32 : i32, i32
  }
}

</mosaic_0001>

<llo_original>
// kernel: tpu_custom_call.1
$region0: #{tpu_custom_call.1}
  #allocation0 [shape = 'u32[]', space=smem, size = 0x4, offset = 0x4, fixed_abs, tag = 'smem constant byte address 0x4 - core index']
  #allocation1 [shape = 'u32[144,128]{1,0:T(1,128)}', space=vmem, size = 0x12000, scoped, tag = 'internal scratch']
  %s0 = inlined_call_operand.hbm [shape: bf16[256,128], index: 0, kind: input, shape index: {}]
  %s1 = inlined_call_operand.hbm [shape: bf16[128,128], index: 1, kind: input, shape index: {}]
  %s2 = inlined_call_operand.vmem [shape: f32[1,128], index: 2, kind: input, shape index: {}]
  %s3 = inlined_call_operand.vmem [shape: f32[1,128], index: 3, kind: input, shape index: {}]
  %s4 = inlined_call_operand.vmem [shape: f32[1,128], index: 4, kind: input, shape index: {}]
  %s5 = inlined_call_operand.hbm [shape: bf16[128,256], index: 5, kind: input, shape index: {}]
  %s6 = inlined_call_operand.vmem [shape: f32[1,256], index: 6, kind: input, shape index: {}]
  %s7 = inlined_call_operand.vmem [shape: f32[1,256], index: 7, kind: input, shape index: {}]
  %s8 = inlined_call_operand.vmem [shape: f32[1,256], index: 8, kind: input, shape index: {}]
  %s9 = inlined_call_operand.hbm [shape: bf16[256,128], index: 9, kind: input, shape index: {}]
  %s10 = inlined_call_operand.vmem [shape: f32[1,128], index: 10, kind: input, shape index: {}]
  %s11 = inlined_call_operand.hbm [shape: f32[256,128], index: 11, kind: output, shape index: {}]
  %s12 = sld [smem:[#allocation0]]
  $region93: #{tpu_custom_call.1} parent=0
    _
  %s14 = ssub.s32 1, %s12
  %s15 = scalar_select 0, %s14, %s12
  $region1: #{tpu_custom_call.1} parent=0
    #allocation2 [shape = 'u8[65536]{0}', space=vmem, size = 0x10000, scoped, tag = 'input window, operand 0']
    #allocation3 [shape = 's32[2]{0}', space=sflag, size = 0x8, scoped, tag = 'scoped memory for tpu_custom_call.1']
    #allocation4 [shape = 's32[2]{0}', space=sflag, size = 0x8, scoped, tag = 'scoped memory for tpu_custom_call.1']
    #allocation5 [shape = 'u8[32768]{0}', space=vmem, size = 0x8000, scoped, tag = 'input window, operand 1, single buffered']
    #allocation6 [shape = 's32[1]{0}', space=sflag, size = 0x4, scoped, tag = 'scoped memory for tpu_custom_call.1']
    #allocation7 [shape = 'u8[65536]{0}', space=vmem, size = 0x10000, scoped, tag = 'input window, operand 5, single buffered']
    #allocation8 [shape = 'u8[65536]{0}', space=vmem, size = 0x10000, scoped, tag = 'input window, operand 9, single buffered']
    #allocation9 [shape = 's32[1]{0}', space=sflag, size = 0x4, scoped, tag = 'scoped memory for tpu_custom_call.1']
    #allocation10 [shape = 'u8[131072]{0}', space=vmem, size = 0x20000, scoped, tag = 'output window, operand 0']
    %16 = vsyncpa [#allocation3], 0
    %s17 = scalar_lea.sflag [#allocation3], 1
    %18 = vsyncpa %s17, 0
    %19 = vsyncpa [#allocation6], 0
    %20 = vsyncpa [#allocation9], 0
    %21 = vsyncpa [#allocation4], 0
    %s22 = scalar_lea.sflag [#allocation4], 1
    %23 = vsyncpa %s22, 0
    loop: start=0, step=1, limit=4
    $region2: #{tpu_custom_call.1} parent=1 // loop_pre_header
      _
    $region3: #{tpu_custom_call.1} parent=1 // loop_header
      %s25 = sphi 0, %s29
      %p26 = scmp.ge.s32.totalorder %s25, 4
      %s35 = sphi 0, %s37
      %s38 = sphi 0, %s35
      %s39 = sphi 0, %s38
      %s55 = sphi 0, %s39
      %s59 = sphi 0, %s59
      %s61 = sphi 0, %s59
      %s62 = sphi 0, %s61
      %s76 = sphi 0, %s62
      %s80 = sphi 0, %s80
      %s82 = sphi 0, %s80
      %s83 = sphi 0, %s82
      %s97 = sphi 0, %s83
      %s101 = sphi 0, %s101
      %s103 = sphi 0, %s101
      %s104 = sphi 0, %s103
      %s118 = sphi 0, %s104
      %s122 = sphi 0, %s122
      %s124 = sphi 0, %s122
      %s125 = sphi 0, %s124
      %s139 = sphi 0, %s125
      %s143 = sphi 0, %s143
      %s145 = sphi 0, %s143
      %s146 = sphi 0, %s145
      %s160 = sphi 0, %s146
      %s164 = sphi 0, %s164
      %s166 = sphi 0, %s164
      %s167 = sphi 0, %s166
      %s181 = sphi 0, %s167
      %s185 = sphi 0, %s185
      %s187 = sphi 0, %s185
      %s188 = sphi 0, %s187
      %s202 = sphi 0, %s188
      %s206 = sphi 0, %s206
      %s208 = sphi 0, %s206
      %s209 = sphi 0, %s208
      %s223 = sphi 0, %s209
      %s227 = sphi 0, %s227
      %s229 = sphi 0, %s227
      %s230 = sphi 0, %s229
      %s244 = sphi 0, %s230
      %s248 = sphi 0, %s248
      %s250 = sphi 0, %s248
      %s251 = sphi 0, %s250
      %s265 = sphi 0, %s251
      %s271 = sphi 0, %s273
      %s274 = sphi 0, %s271
      %s275 = sphi 0, %s274
      %s291 = sphi 0, %s275
    $region4: #{tpu_custom_call.1} parent=1 // loop_header_branch
      %28 = sbr.rel (%p26) target = $region8
    $region5: #{tpu_custom_call.1} parent=1 // loop_body
      %s30 = ssub.s32 %s25, 1
      %s31 = ssub.s32 %s25, 2
      %s32 = sadd.s32 %s25, 1
      %s33 = ssub.s32 %s25, %s32
      %p34 = scmp.eq.s32.totalorder %s33, 0
      %s36 = sadd.s32 %s35, 1
      %s37 = scalar_select %p34, %s35, %s36
      %p40 = pneg %p34
      %p41 = scmp.eq.s32.totalorder %s25, 1
      %p42 = por %p40, %p41
      %p43 = scmp.ne.s32.totalorder %s35, %s38
      %p44 = scmp.eq.s32.totalorder %s25, 0
      %p45 = por %p43, %p44
      %p46 = scmp.ne.s32.totalorder %s35, %s38
      %p47 = scmp.eq.s32.totalorder %s30, 1
      %p48 = por %p46, %p47
      %p49 = scmp.ne.s32.totalorder %s38, %s39
      %p50 = scmp.eq.s32.totalorder %s30, 0
      %p51 = por %p49, %p50
      %p52 = scmp.ne.s32.totalorder %s38, %s39
      %p53 = scmp.eq.s32.totalorder %s31, 1
      %p54 = por %p52, %p53
      %p56 = scmp.ne.s32.totalorder %s39, %s55
      %p57 = scmp.eq.s32.totalorder %s31, 0
      %p58 = por %p56, %p57
      %s60 = sadd.s32 %s59, 1
      %p63 = scmp.eq.s32.totalorder %s25, 1
      %p64 = scmp.ne.s32.totalorder %s59, %s61
      %p65 = scmp.eq.s32.totalorder %s25, 0
      %p66 = por %p64, %p65
      %p67 = scmp.ne.s32.totalorder %s59, %s61
      %p68 = scmp.eq.s32.totalorder %s30, 1
      %p69 = por %p67, %p68
      %p70 = scmp.ne.s32.totalorder %s61, %s62
      %p71 = scmp.eq.s32.totalorder %s30, 0
      %p72 = por %p70, %p71
      %p73 = scmp.ne.s32.totalorder %s61, %s62
      %p74 = scmp.eq.s32.totalorder %s31, 1
      %p75 = por %p73, %p74
      %p77 = scmp.ne.s32.totalorder %s62, %s76
      %p78 = scmp.eq.s32.totalorder %s31, 0
      %p79 = por %p77, %p78
      %s81 = sadd.s32 %s80, 1
      %p84 = scmp.eq.s32.totalorder %s25, 1
      %p85 = scmp.ne.s32.totalorder %s80, %s82
      %p86 = scmp.eq.s32.totalorder %s25, 0
      %p87 = por %p85, %p86
      %p88 = scmp.ne.s32.totalorder %s80, %s82
      %p89 = scmp.eq.s32.totalorder %s30, 1
      %p90 = por %p88, %p89
      %p91 = scmp.ne.s32.totalorder %s82, %s83
      %p92 = scmp.eq.s32.totalorder %s30, 0
      %p93 = por %p91, %p92
      %p94 = scmp.ne.s32.totalorder %s82, %s83
      %p95 = scmp.eq.s32.totalorder %s31, 1
      %p96 = por %p94, %p95
      %p98 = scmp.ne.s32.totalorder %s83, %s97
      %p99 = scmp.eq.s32.totalorder %s31, 0
      %p100 = por %p98, %p99
      %s102 = sadd.s32 %s101, 1
      %p105 = scmp.eq.s32.totalorder %s25, 1
      %p106 = scmp.ne.s32.totalorder %s101, %s103
      %p107 = scmp.eq.s32.totalorder %s25, 0
      %p108 = por %p106, %p107
      %p109 = scmp.ne.s32.totalorder %s101, %s103
      %p110 = scmp.eq.s32.totalorder %s30, 1
      %p111 = por %p109, %p110
      %p112 = scmp.ne.s32.totalorder %s103, %s104
      %p113 = scmp.eq.s32.totalorder %s30, 0
      %p114 = por %p112, %p113
      %p115 = scmp.ne.s32.totalorder %s103, %s104
      %p116 = scmp.eq.s32.totalorder %s31, 1
      %p117 = por %p115, %p116
      %p119 = scmp.ne.s32.totalorder %s104, %s118
      %p120 = scmp.eq.s32.totalorder %s31, 0
      %p121 = por %p119, %p120
      %s123 = sadd.s32 %s122, 1
      %p126 = scmp.eq.s32.totalorder %s25, 1
      %p127 = scmp.ne.s32.totalorder %s122, %s124
      %p128 = scmp.eq.s32.totalorder %s25, 0
      %p129 = por %p127, %p128
      %p130 = scmp.ne.s32.totalorder %s122, %s124
      %p131 = scmp.eq.s32.totalorder %s30, 1
      %p132 = por %p130, %p131
      %p133 = scmp.ne.s32.totalorder %s124, %s125
      %p134 = scmp.eq.s32.totalorder %s30, 0
      %p135 = por %p133, %p134
      %p136 = scmp.ne.s32.totalorder %s124, %s125
      %p137 = scmp.eq.s32.totalorder %s31, 1
      %p138 = por %p136, %p137
      %p140 = scmp.ne.s32.totalorder %s125, %s139
      %p141 = scmp.eq.s32.totalorder %s31, 0
      %p142 = por %p140, %p141
      %s144 = sadd.s32 %s143, 1
      %p147 = scmp.eq.s32.totalorder %s25, 1
      %p148 = scmp.ne.s32.totalorder %s143, %s145
      %p149 = scmp.eq.s32.totalorder %s25, 0
      %p150 = por %p148, %p149
      %p151 = scmp.ne.s32.totalorder %s143, %s145
      %p152 = scmp.eq.s32.totalorder %s30, 1
      %p153 = por %p151, %p152
      %p154 = scmp.ne.s32.totalorder %s145, %s146
      %p155 = scmp.eq.s32.totalorder %s30, 0
      %p156 = por %p154, %p155
      %p157 = scmp.ne.s32.totalorder %s145, %s146
      %p158 = scmp.eq.s32.totalorder %s31, 1
      %p159 = por %p157, %p158
      %p161 = scmp.ne.s32.totalorder %s146, %s160
      %p162 = scmp.eq.s32.totalorder %s31, 0
      %p163 = por %p161, %p162
      %s165 = sadd.s32 %s164, 1
      %p168 = scmp.eq.s32.totalorder %s25, 1
      %p169 = scmp.ne.s32.totalorder %s164, %s166
      %p170 = scmp.eq.s32.totalorder %s25, 0
      %p171 = por %p169, %p170
      %p172 = scmp.ne.s32.totalorder %s164, %s166
      %p173 = scmp.eq.s32.totalorder %s30, 1
      %p174 = por %p172, %p173
      %p175 = scmp.ne.s32.totalorder %s166, %s167
      %p176 = scmp.eq.s32.totalorder %s30, 0
      %p177 = por %p175, %p176
      %p178 = scmp.ne.s32.totalorder %s166, %s167
      %p179 = scmp.eq.s32.totalorder %s31, 1
      %p180 = por %p178, %p179
      %p182 = scmp.ne.s32.totalorder %s167, %s181
      %p183 = scmp.eq.s32.totalorder %s31, 0
      %p184 = por %p182, %p183
      %s186 = sadd.s32 %s185, 1
      %p189 = scmp.eq.s32.totalorder %s25, 1
      %p190 = scmp.ne.s32.totalorder %s185, %s187
      %p191 = scmp.eq.s32.totalorder %s25, 0
      %p192 = por %p190, %p191
      %p193 = scmp.ne.s32.totalorder %s185, %s187
      %p194 = scmp.eq.s32.totalorder %s30, 1
      %p195 = por %p193, %p194
      %p196 = scmp.ne.s32.totalorder %s187, %s188
      %p197 = scmp.eq.s32.totalorder %s30, 0
      %p198 = por %p196, %p197
      %p199 = scmp.ne.s32.totalorder %s187, %s188
      %p200 = scmp.eq.s32.totalorder %s31, 1
      %p201 = por %p199, %p200
      %p203 = scmp.ne.s32.totalorder %s188, %s202
      %p204 = scmp.eq.s32.totalorder %s31, 0
      %p205 = por %p203, %p204
      %s207 = sadd.s32 %s206, 1
      %p210 = scmp.eq.s32.totalorder %s25, 1
      %p211 = scmp.ne.s32.totalorder %s206, %s208
      %p212 = scmp.eq.s32.totalorder %s25, 0
      %p213 = por %p211, %p212
      %p214 = scmp.ne.s32.totalorder %s206, %s208
      %p215 = scmp.eq.s32.totalorder %s30, 1
      %p216 = por %p214, %p215
      %p217 = scmp.ne.s32.totalorder %s208, %s209
      %p218 = scmp.eq.s32.totalorder %s30, 0
      %p219 = por %p217, %p218
      %p220 = scmp.ne.s32.totalorder %s208, %s209
      %p221 = scmp.eq.s32.totalorder %s31, 1
      %p222 = por %p220, %p221
      %p224 = scmp.ne.s32.totalorder %s209, %s223
      %p225 = scmp.eq.s32.totalorder %s31, 0
      %p226 = por %p224, %p225
      %s228 = sadd.s32 %s227, 1
      %p231 = scmp.eq.s32.totalorder %s25, 1
      %p232 = scmp.ne.s32.totalorder %s227, %s229
      %p233 = scmp.eq.s32.totalorder %s25, 0
      %p234 = por %p232, %p233
      %p235 = scmp.ne.s32.totalorder %s227, %s229
      %p236 = scmp.eq.s32.totalorder %s30, 1
      %p237 = por %p235, %p236
      %p238 = scmp.ne.s32.totalorder %s229, %s230
      %p239 = scmp.eq.s32.totalorder %s30, 0
      %p240 = por %p238, %p239
      %p241 = scmp.ne.s32.totalorder %s229, %s230
      %p242 = scmp.eq.s32.totalorder %s31, 1
      %p243 = por %p241, %p242
      %p245 = scmp.ne.s32.totalorder %s230, %s244
      %p246 = scmp.eq.s32.totalorder %s31, 0
      %p247 = por %p245, %p246
      %s249 = sadd.s32 %s248, 1
      %p252 = scmp.eq.s32.totalorder %s25, 1
      %p253 = scmp.ne.s32.totalorder %s248, %s250
      %p254 = scmp.eq.s32.totalorder %s25, 0
      %p255 = por %p253, %p254
      %p256 = scmp.ne.s32.totalorder %s248, %s250
      %p257 = scmp.eq.s32.totalorder %s30, 1
      %p258 = por %p256, %p257
      %p259 = scmp.ne.s32.totalorder %s250, %s251
      %p260 = scmp.eq.s32.totalorder %s30, 0
      %p261 = por %p259, %p260
      %p262 = scmp.ne.s32.totalorder %s250, %s251
      %p263 = scmp.eq.s32.totalorder %s31, 1
      %p264 = por %p262, %p263
      %p266 = scmp.ne.s32.totalorder %s251, %s265
      %p267 = scmp.eq.s32.totalorder %s31, 0
      %p268 = por %p266, %p267
      %s269 = ssub.s32 %s25, %s32
      %p270 = scmp.eq.s32.totalorder %s269, 0
      %s272 = sadd.s32 %s271, 1
      %s273 = scalar_select %p270, %s271, %s272
      %p276 = pneg %p270
      %p277 = scmp.eq.s32.totalorder %s25, 1
      %p278 = por %p276, %p277
      %p279 = scmp.ne.s32.totalorder %s271, %s274
      %p280 = scmp.eq.s32.totalorder %s25, 0
      %p281 = por %p279, %p280
      %p282 = scmp.ne.s32.totalorder %s271, %s274
      %p283 = scmp.eq.s32.totalorder %s30, 1
      %p284 = por %p282, %p283
      %p285 = scmp.ne.s32.totalorder %s274, %s275
      %p286 = scmp.eq.s32.totalorder %s30, 0
      %p287 = por %p285, %p286
      %p288 = scmp.ne.s32.totalorder %s274, %s275
      %p289 = scmp.eq.s32.totalorder %s31, 1
      %p290 = por %p288, %p289
      %p292 = scmp.ne.s32.totalorder %s275, %s291
      %p293 = scmp.eq.s32.totalorder %s31, 0
      %p294 = por %p292, %p293
      %p295 = scmp.le.s32.totalorder 1, %s25
      %p296 = scmp.lt.s32.totalorder %s25, 3
      %p297 = pnand %p295, %p296
      %p298 = pneg %p297
      // Predicated region
      $region9: #{tpu_custom_call.1} parent=5 // pred_check
        _
      $region10: #{tpu_custom_call.1} parent=5 // pred_check_branch
        %300 = sbr.rel (%p297) target = $region12
      $region11: #{tpu_custom_call.1} parent=5 // pred_region
        %s301 = ssub.s32 %s25, 1
        // Predicated region
        $region13: #{tpu_custom_call.1} parent=11 // pred_check
          %p302 = pneg %p72
        $region14: #{tpu_custom_call.1} parent=11 // pred_check_branch
          %304 = sbr.rel (%p302) target = $region16
        $region15: #{tpu_custom_call.1} parent=11 // pred_region
          %s306 = ssub.s32 1024, 1024
          %307 = vsyncadd [#allocation6], %s306
          %s308 = sshll.u32 [#allocation5], 4
          %s309 = int_to_ptr.vmem [resolvable:$true] %s308
          %314 = dma.hbm_to_vmem [thread:$0]  %s1, 1024, %s309, [#allocation6], 64, 64, 4
        $region16: #{tpu_custom_call.1} parent=11 // pred_fallthru
          _
        // Predicated region
        $region17: #{tpu_custom_call.1} parent=11 // pred_check
          %p315 = pneg %p93
        $region18: #{tpu_custom_call.1} parent=11 // pred_check_branch
          %317 = sbr.rel (%p315) target = $region20
        $region19: #{tpu_custom_call.1} parent=11 // pred_region
          _
        $region20: #{tpu_custom_call.1} parent=11 // pred_fallthru
          _
        // Predicated region
        $region21: #{tpu_custom_call.1} parent=11 // pred_check
          %p318 = pneg %p114
        $region22: #{tpu_custom_call.1} parent=11 // pred_check_branch
          %320 = sbr.rel (%p318) target = $region24
        $region23: #{tpu_custom_call.1} parent=11 // pred_region
          _
        $region24: #{tpu_custom_call.1} parent=11 // pred_fallthru
          _
        // Predicated region
        $region25: #{tpu_custom_call.1} parent=11 // pred_check
          %p321 = pneg %p135
        $region26: #{tpu_custom_call.1} parent=11 // pred_check_branch
          %323 = sbr.rel (%p321) target = $region28
        $region27: #{tpu_custom_call.1} parent=11 // pred_region
          _
        $region28: #{tpu_custom_call.1} parent=11 // pred_fallthru
          _
        // Predicated region
        $region29: #{tpu_custom_call.1} parent=11 // pred_check
          %p324 = pneg %p156
        $region30: #{tpu_custom_call.1} parent=11 // pred_check_branch
          %326 = sbr.rel (%p324) target = $region32
        $region31: #{tpu_custom_call.1} parent=11 // pred_region
          %s328 = ssub.s32 2048, 2048
          %329 = vsyncadd [#allocation6], %s328
          %s330 = sshll.u32 [#allocation7], 4
          %s331 = int_to_ptr.vmem [resolvable:$true] %s330
          %336 = dma.hbm_to_vmem [thread:$0]  %s5, 2048, %s331, [#allocation6], 128, 128, 8
        $region32: #{tpu_custom_call.1} parent=11 // pred_fallthru
          _
        // Predicated region
        $region33: #{tpu_custom_call.1} parent=11 // pred_check
          %p337 = pneg %p177
        $region34: #{tpu_custom_call.1} parent=11 // pred_check_branch
          %339 = sbr.rel (%p337) target = $region36
        $region35: #{tpu_custom_call.1} parent=11 // pred_region
          _
        $region36: #{tpu_custom_call.1} parent=11 // pred_fallthru
          _
        // Predicated region
        $region37: #{tpu_custom_call.1} parent=11 // pred_check
          %p340 = pneg %p198
        $region38: #{tpu_custom_call.1} parent=11 // pred_check_branch
          %342 = sbr.rel (%p340) target = $region40
        $region39: #{tpu_custom_call.1} parent=11 // pred_region
          _
        $region40: #{tpu_custom_call.1} parent=11 // pred_fallthru
          _
        // Predicated region
        $region41: #{tpu_custom_call.1} parent=11 // pred_check
          %p343 = pneg %p219
        $region42: #{tpu_custom_call.1} parent=11 // pred_check_branch
          %345 = sbr.rel (%p343) target = $region44
        $region43: #{tpu_custom_call.1} parent=11 // pred_region
          _
        $region44: #{tpu_custom_call.1} parent=11 // pred_fallthru
          _
        // Predicated region
        $region45: #{tpu_custom_call.1} parent=11 // pred_check
          %p346 = pneg %p240
        $region46: #{tpu_custom_call.1} parent=11 // pred_check_branch
          %348 = sbr.rel (%p346) target = $region48
        $region47: #{tpu_custom_call.1} parent=11 // pred_region
          %s350 = ssub.s32 2048, 2048
          %351 = vsyncadd [#allocation9], %s350
          %s352 = sshll.u32 [#allocation8], 4
          %s353 = int_to_ptr.vmem [resolvable:$true] %s352
          %358 = dma.hbm_to_vmem [thread:$0]  %s9, 2048, %s353, [#allocation9], 64, 64, 4
        $region48: #{tpu_custom_call.1} parent=11 // pred_fallthru
          _
        // Predicated region
        $region49: #{tpu_custom_call.1} parent=11 // pred_check
          %p359 = pneg %p261
        $region50: #{tpu_custom_call.1} parent=11 // pred_check_branch
          %361 = sbr.rel (%p359) target = $region52
        $region51: #{tpu_custom_call.1} parent=11 // pred_region
          _
        $region52: #{tpu_custom_call.1} parent=11 // pred_fallthru
          _
      $region12: #{tpu_custom_call.1} parent=5 // pred_fallthru
        _
      %p362 = scmp.lt.s32.totalorder %s25, 2
      // Predicated region
      $region53: #{tpu_custom_call.1} parent=5 // pred_check
        %p363 = pneg %p362
      $region54: #{tpu_custom_call.1} parent=5 // pred_check_branch
        %365 = sbr.rel (%p363) target = $region56
      $region55: #{tpu_custom_call.1} parent=5 // pred_region
        // Predicated region
        $region57: #{tpu_custom_call.1} parent=55 // pred_check
          %p366 = pneg %p45
        $region58: #{tpu_custom_call.1} parent=55 // pred_check_branch
          %368 = sbr.rel (%p366) target = $region60
        $region59: #{tpu_custom_call.1} parent=55 // pred_region
          %s369 = sand.u32 %s35, 1
          %s370 = scalar_lea.sflag [#allocation3], %s369
          %s371 = sand.u32 %s35, 1
          %s372 = smul.addr %s371, 64
          %s373 = scalar_lea.vmem [#allocation2], %s372
          %s374 = smul.u32 16, %s25
          %s376 = ssub.s32 1024, 1024
          %377 = vsyncadd %s370, %s376
          %s378 = smul.addr %s374, 64
          %s379 = scalar_lea.hbm %s0, %s378
          %s380 = sshll.u32 %s373, 4
          %s381 = int_to_ptr.vmem [resolvable:$true] %s380
          %386 = dma.hbm_to_vmem [thread:$0]  %s379, 1024, %s381, %s370, 64, 64, 4
        $region60: #{tpu_custom_call.1} parent=55 // pred_fallthru
          _
      $region56: #{tpu_custom_call.1} parent=5 // pred_fallthru
        _
      %p387 = scmp.le.s32.totalorder 1, %s25
      %p388 = scmp.lt.s32.totalorder %s25, 3
      %p389 = pnand %p387, %p388
      %p390 = pneg %p389
      // Predicated region
      $region61: #{tpu_custom_call.1} parent=5 // pred_check
        _
      $region62: #{tpu_custom_call.1} parent=5 // pred_check_branch
        %392 = sbr.rel (%p389) target = $region64
      $region63: #{tpu_custom_call.1} parent=5 // pred_region
        %s393 = ssub.s32 %s25, 1
        %s394 = sand.u32 %s38, 1
        %s395 = scalar_lea.sflag [#allocation3], %s394
        %s396 = sand.u32 %s38, 1
        %s397 = smul.addr %s396, 64
        %s398 = scalar_lea.vmem [#allocation2], %s397
        // Predicated region
        $region65: #{tpu_custom_call.1} parent=63 // pred_check
          %p399 = pneg %p51
        $region66: #{tpu_custom_call.1} parent=63 // pred_check_branch
          %401 = sbr.rel (%p399) target = $region68
        $region67: #{tpu_custom_call.1} parent=63 // pred_region
          %402 = dma.done %s395, 1024
        $region68: #{tpu_custom_call.1} parent=63 // pred_fallthru
          _
        // Predicated region
        $region69: #{tpu_custom_call.1} parent=63 // pred_check
          %p403 = pneg %p72
        $region70: #{tpu_custom_call.1} parent=63 // pred_check_branch
          %405 = sbr.rel (%p403) target = $region72
        $region71: #{tpu_custom_call.1} parent=63 // pred_region
          %406 = dma.done [#allocation6], 1024
        $region72: #{tpu_custom_call.1} parent=63 // pred_fallthru
          _
        // Predicated region
        $region73: #{tpu_custom_call.1} parent=63 // pred_check
          %p407 = pneg %p156
        $region74: #{tpu_custom_call.1} parent=63 // pred_check_branch
          %409 = sbr.rel (%p407) target = $region76
        $region75: #{tpu_custom_call.1} parent=63 // pred_region
          %410 = dma.done [#allocation6], 2048
        $region76: #{tpu_custom_call.1} parent=63 // pred_fallthru
          _
        // Predicated region
        $region77: #{tpu_custom_call.1} parent=63 // pred_check
          %p411 = pneg %p240
        $region78: #{tpu_custom_call.1} parent=63 // pred_check_branch
          %413 = sbr.rel (%p411) target = $region80
        $region79: #{tpu_custom_call.1} parent=63 // pred_region
          %414 = dma.done [#allocation9], 2048
        $region80: #{tpu_custom_call.1} parent=63 // pred_fallthru
          _
        %s415 = sand.u32 %s38, 1
        %s416 = scalar_lea.sflag [#allocation3], %s415
        %s417 = sand.u32 %s38, 1
        %s418 = smul.addr %s417, 64
        %s419 = scalar_lea.vmem [#allocation2], %s418
        %p420 = pneg %p51
        %p421 = pneg %p48
        %p422 = pneg %p72
        %p423 = pneg %p69
        %p424 = pneg %p93
        %p425 = pneg %p90
        %p426 = pneg %p114
        %p427 = pneg %p111
        %p428 = pneg %p135
        %p429 = pneg %p132
        %p430 = pneg %p156
        %p431 = pneg %p153
        %p432 = pneg %p177
        %p433 = pneg %p174
        %p434 = pneg %p198
        %p435 = pneg %p195
        %p436 = pneg %p219
        %p437 = pneg %p216
        %p438 = pneg %p240
        %p439 = pneg %p237
        %p440 = pneg %p261
        %p441 = pneg %p258
        %p442 = pneg %p287
        %p443 = pneg %p284
        %s444 = sand.u32 %s274, 1
        %s445 = scalar_lea.sflag [#allocation4], %s444
        %s446 = sand.u32 %s274, 1
        %s447 = smul.addr %s446, 128
        %s448 = scalar_lea.vmem [#allocation10], %s447
        %s449 = smul.u32 16, %s30
        %s450 = smul.u32 16, %s30
        %v452 = vld [vmem:[%s398] sm:$0xf]
        %v453 = vld [vmem:[%s398 + $0x4] sm:$0xf]
        %v454 = vld [vmem:[%s398 + $0x8] sm:$0xf]
        %v455 = vld [vmem:[%s398 + $0xc] sm:$0xf]
        %v456 = vld [vmem:[%s398 + $0x10] sm:$0xf]
        %v457 = vld [vmem:[%s398 + $0x14] sm:$0xf]
        %v458 = vld [vmem:[%s398 + $0x18] sm:$0xf]
        %v459 = vld [vmem:[%s398 + $0x1c] sm:$0xf]
        %v460 = vld [vmem:[%s398 + $0x20] sm:$0xf]
        %v461 = vld [vmem:[%s398 + $0x24] sm:$0xf]
        %v462 = vld [vmem:[%s398 + $0x28] sm:$0xf]
        %v463 = vld [vmem:[%s398 + $0x2c] sm:$0xf]
        %v464 = vld [vmem:[%s398 + $0x30] sm:$0xf]
        %v465 = vld [vmem:[%s398 + $0x34] sm:$0xf]
        %v466 = vld [vmem:[%s398 + $0x38] sm:$0xf]
        %v467 = vld [vmem:[%s398 + $0x3c] sm:$0xf]
        %v468 = vld [vmem:[#allocation5] sm:$0xf]
        %v469 = vld [vmem:[#allocation5 + $0x4] sm:$0xf]
        %v470 = vld [vmem:[#allocation5 + $0x8] sm:$0xf]
        %v471 = vld [vmem:[#allocation5 + $0xc] sm:$0xf]
        %v472 = vld [vmem:[#allocation5 + $0x10] sm:$0xf]
        %v473 = vld [vmem:[#allocation5 + $0x14] sm:$0xf]
        %v474 = vld [vmem:[#allocation5 + $0x18] sm:$0xf]
        %v475 = vld [vmem:[#allocation5 + $0x1c] sm:$0xf]
        %v476 = vld [vmem:[#allocation5 + $0x20] sm:$0xf]
        %v477 = vld [vmem:[#allocation5 + $0x24] sm:$0xf]
        %v478 = vld [vmem:[#allocation5 + $0x28] sm:$0xf]
        %v479 = vld [vmem:[#allocation5 + $0x2c] sm:$0xf]
        %v480 = vld [vmem:[#allocation5 + $0x30] sm:$0xf]
        %v481 = vld [vmem:[#allocation5 + $0x34] sm:$0xf]
        %v482 = vld [vmem:[#allocation5 + $0x38] sm:$0xf]
        %v483 = vld [vmem:[#allocation5 + $0x3c] sm:$0xf]
        %v484 = vld [vmem:[%s2] sm:$0x1]
        %v486 = vlaneseq
        %v487 = vshrl.u32 %v486, 7
        %v488 = vsub.s32 0, %v487
        %v489 = vrot.slane %v484, %v488
        %v507 = vunpack.c.l.b16 %v452
        %v508 = vunpack.c.l.b16 %v453
        %v509 = vunpack.c.l.b16 %v454
        %v510 = vunpack.c.l.b16 %v455
        %v511 = vunpack.c.l.b16 %v456
        %v512 = vunpack.c.l.b16 %v457
        %v513 = vunpack.c.l.b16 %v458
        %v514 = vunpack.c.l.b16 %v459
        %v515 = vunpack.c.l.b16 %v460
        %v516 = vunpack.c.l.b16 %v461
        %v517 = vunpack.c.l.b16 %v462
        %v518 = vunpack.c.l.b16 %v463
        %v519 = vunpack.c.l.b16 %v464
        %v520 = vunpack.c.l.b16 %v465
        %v521 = vunpack.c.l.b16 %v466
        %v522 = vunpack.c.l.b16 %v467
        %v523 = vpack.c.b16 %v508, %v507
        %v524 = vpack.c.b16 %v510, %v509
        %v525 = vpack.c.b16 %v512, %v511
        %v526 = vpack.c.b16 %v514, %v513
        %v527 = vpack.c.b16 %v516, %v515
        %v528 = vpack.c.b16 %v518, %v517
        %v529 = vpack.c.b16 %v520, %v519
        %v530 = vpack.c.b16 %v522, %v521
        %v555 = vunpack.c.l.b16 %v468
        %v556 = vunpack.c.l.b16 %v469
        %v557 = vunpack.c.l.b16 %v470
        %v558 = vunpack.c.l.b16 %v471
        %v559 = vunpack.c.l.b16 %v472
        %v560 = vunpack.c.l.b16 %v473
        %v561 = vunpack.c.l.b16 %v474
        %v562 = vunpack.c.l.b16 %v475
        %v563 = vunpack.c.l.b16 %v476
        %v564 = vunpack.c.l.b16 %v477
        %v565 = vunpack.c.l.b16 %v478
        %v566 = vunpack.c.l.b16 %v479
        %v567 = vunpack.c.l.b16 %v480
        %v568 = vunpack.c.l.b16 %v481
        %v569 = vunpack.c.l.b16 %v482
        %v570 = vunpack.c.l.b16 %v483
        %v571 = vpack.c.b16 %v556, %v555
        %v572 = vpack.c.b16 %v558, %v557
        %v573 = vpack.c.b16 %v560, %v559
        %v574 = vpack.c.b16 %v562, %v561
        %v575 = vpack.c.b16 %v564, %v563
        %v576 = vpack.c.b16 %v566, %v565
        %v577 = vpack.c.b16 %v568, %v567
        %v578 = vpack.c.b16 %v570, %v569
        %587 = vmatprep.subr.bf16.mxu0 0
        %588 = vmatpush1.bf16.msra.mxu0 %v571
        %589 = vmatprep.subr.bf16.mxu0 0
        %590 = vmatpush1.bf16.msra.mxu0 %v572
        %591 = vmatprep.subr.bf16.mxu0 0
        %592 = vmatpush1.bf16.msra.mxu0 %v573
        %593 = vmatprep.subr.bf16.mxu0 0
        %594 = vmatpush1.bf16.msra.mxu0 %v574
        %595 = vmatprep.subr.bf16.mxu0 0
        %596 = vmatpush1.bf16.msra.mxu0 %v575
        %597 = vmatprep.subr.bf16.mxu0 0
        %598 = vmatpush1.bf16.msra.mxu0 %v576
        %599 = vmatprep.subr.bf16.mxu0 0
        %600 = vmatpush1.bf16.msra.mxu0 %v577
        %601 = vmatprep.subr.bf16.mxu0 0
        %602 = vmatpush1.bf16.msra.mxu0 %v578
        %603 = vmatprep.subr.bf16.mxu0 0
        %604 = vmatpush1.bf16.msra.mxu0 0
        %605 = vmatprep.subr.bf16.mxu0 0
        %606 = vmatpush1.bf16.msra.mxu0 0
        %607 = vmatprep.subr.bf16.mxu0 0
        %608 = vmatpush1.bf16.msra.mxu0 0
        %609 = vmatprep.subr.bf16.mxu0 0
        %610 = vmatpush1.bf16.msra.mxu0 0
        %611 = vmatprep.subr.bf16.mxu0 0
        %612 = vmatpush1.bf16.msra.mxu0 0
        %613 = vmatprep.subr.bf16.mxu0 0
        %614 = vmatpush1.bf16.msra.mxu0 0
        %615 = vmatprep.subr.bf16.mxu0 0
        %616 = vmatpush1.bf16.msra.mxu0 0
        %617 = vmatprep.subr.bf16.mxu0 0
        %618 = vmatpush1.bf16.msra.mxu0 0
        %619 = vmatprep.mubr.bf16.mxu0 0
        %620 = vmatmul.mubr.bf16.gmra.mrb[0].mxu0 %v523
        %v621 = vpop.f32.mrb[0].mxu0
        %v622 = vadd.f32 %v489, %v621
        %v623 = vpop.f32.mrb[0].mxu0
        %v624 = vpop.f32.mrb[0].mxu0
        %v625 = vadd.f32 %v489, %v624
        %v626 = vpop.f32.mrb[0].mxu0
        %627 = vmatprep.mubr.bf16.mxu0 0
        %628 = vmatmul.mubr.bf16.gmra.mrb[0].mxu0 %v524
        %v629 = vpop.f32.mrb[0].mxu0
        %v630 = vadd.f32 %v489, %v629
        %v631 = vpop.f32.mrb[0].mxu0
        %v632 = vpop.f32.mrb[0].mxu0
        %v633 = vadd.f32 %v489, %v632
        %v634 = vpop.f32.mrb[0].mxu0
        %635 = vmatprep.mubr.bf16.mxu0 0
        %636 = vmatmul.mubr.bf16.gmra.mrb[0].mxu0 %v525
        %v637 = vpop.f32.mrb[0].mxu0
        %v638 = vadd.f32 %v489, %v637
        %v639 = vpop.f32.mrb[0].mxu0
        %v640 = vpop.f32.mrb[0].mxu0
        %v641 = vadd.f32 %v489, %v640
        %v642 = vpop.f32.mrb[0].mxu0
        %643 = vmatprep.mubr.bf16.mxu0 0
        %644 = vmatmul.mubr.bf16.gmra.mrb[0].mxu0 %v526
        %v645 = vpop.f32.mrb[0].mxu0
        %v646 = vadd.f32 %v489, %v645
        %v647 = vpop.f32.mrb[0].mxu0
        %v648 = vpop.f32.mrb[0].mxu0
        %v649 = vadd.f32 %v489, %v648
        %v650 = vpop.f32.mrb[0].mxu0
        %651 = vmatprep.mubr.bf16.mxu0 0
        %652 = vmatmul.mubr.bf16.gmra.mrb[0].mxu0 %v527
        %v653 = vpop.f32.mrb[0].mxu0
        %v654 = vadd.f32 %v489, %v653
        %v655 = vpop.f32.mrb[0].mxu0
        %v656 = vpop.f32.mrb[0].mxu0
        %v657 = vadd.f32 %v489, %v656
        %v658 = vpop.f32.mrb[0].mxu0
        %659 = vmatprep.mubr.bf16.mxu0 0
        %660 = vmatmul.mubr.bf16.gmra.mrb[0].mxu0 %v528
        %v661 = vpop.f32.mrb[0].mxu0
        %v662 = vadd.f32 %v489, %v661
        %v663 = vpop.f32.mrb[0].mxu0
        %v664 = vpop.f32.mrb[0].mxu0
        %v665 = vadd.f32 %v489, %v664
        %v666 = vpop.f32.mrb[0].mxu0
        %667 = vmatprep.mubr.bf16.mxu0 0
        %668 = vmatmul.mubr.bf16.gmra.mrb[0].mxu0 %v529
        %v669 = vpop.f32.mrb[0].mxu0
        %v670 = vadd.f32 %v489, %v669
        %v671 = vpop.f32.mrb[0].mxu0
        %v672 = vpop.f32.mrb[0].mxu0
        %v673 = vadd.f32 %v489, %v672
        %v674 = vpop.f32.mrb[0].mxu0
        %675 = vmatprep.mubr.bf16.mxu0 0
        %676 = vmatmul.mubr.bf16.gmra.mrb[0].mxu0 %v530
        %v677 = vpop.f32.mrb[0].mxu0
        %v678 = vadd.f32 %v489, %v677
        %v679 = vpop.f32.mrb[0].mxu0
        %v680 = vpop.f32.mrb[0].mxu0
        %v681 = vadd.f32 %v489, %v680
        %v682 = vpop.f32.mrb[0].mxu0
        %683 = vdwg.mxu0
        %v684 = vld [vmem:[%s3] sm:$0x1]
        %v685 = vld [vmem:[%s4] sm:$0x1]
        %686 = vadd.xlane.f32.xlu0 %v622
        %v687 = vpop.xlane.xlu0 %686
        %688 = vadd.xlane.f32.xlu0 %v625
        %v689 = vpop.xlane.xlu0 %688
        %690 = vadd.xlane.f32.xlu0 %v630
        %v691 = vpop.xlane.xlu0 %690
        %692 = vadd.xlane.f32.xlu0 %v633
        %v693 = vpop.xlane.xlu0 %692
        %694 = vadd.xlane.f32.xlu0 %v638
        %v695 = vpop.xlane.xlu0 %694
        %696 = vadd.xlane.f32.xlu0 %v641
        %v697 = vpop.xlane.xlu0 %696
        %698 = vadd.xlane.f32.xlu0 %v646
        %v699 = vpop.xlane.xlu0 %698
        %700 = vadd.xlane.f32.xlu0 %v649
        %v701 = vpop.xlane.xlu0 %700
        %702 = vadd.xlane.f32.xlu0 %v654
        %v703 = vpop.xlane.xlu0 %702
        %704 = vadd.xlane.f32.xlu0 %v657
        %v705 = vpop.xlane.xlu0 %704
        %706 = vadd.xlane.f32.xlu0 %v662
        %v707 = vpop.xlane.xlu0 %706
        %708 = vadd.xlane.f32.xlu0 %v665
        %v709 = vpop.xlane.xlu0 %708
        %710 = vadd.xlane.f32.xlu0 %v670
        %v711 = vpop.xlane.xlu0 %710
        %712 = vadd.xlane.f32.xlu0 %v673
        %v713 = vpop.xlane.xlu0 %712
        %714 = vadd.xlane.f32.xlu0 %v678
        %v715 = vpop.xlane.xlu0 %714
        %716 = vadd.xlane.f32.xlu0 %v681
        %v717 = vpop.xlane.xlu0 %716
        %v718 = vmul.f32 %v622, %v622
        %v719 = vmul.f32 %v625, %v625
        %v720 = vmul.f32 %v630, %v630
        %v721 = vmul.f32 %v633, %v633
        %v722 = vmul.f32 %v638, %v638
        %v723 = vmul.f32 %v641, %v641
        %v724 = vmul.f32 %v646, %v646
        %v725 = vmul.f32 %v649, %v649
        %v726 = vmul.f32 %v654, %v654
        %v727 = vmul.f32 %v657, %v657
        %v728 = vmul.f32 %v662, %v662
        %v729 = vmul.f32 %v665, %v665
        %v730 = vmul.f32 %v670, %v670
        %v731 = vmul.f32 %v673, %v673
        %v732 = vmul.f32 %v678, %v678
        %v733 = vmul.f32 %v681, %v681
        %734 = vadd.xlane.f32.xlu0 %v718
        %v735 = vpop.xlane.xlu0 %734
        %736 = vadd.xlane.f32.xlu0 %v719
        %v737 = vpop.xlane.xlu0 %736
        %738 = vadd.xlane.f32.xlu0 %v720
        %v739 = vpop.xlane.xlu0 %738
        %740 = vadd.xlane.f32.xlu0 %v721
        %v741 = vpop.xlane.xlu0 %740
        %742 = vadd.xlane.f32.xlu0 %v722
        %v743 = vpop.xlane.xlu0 %742
        %744 = vadd.xlane.f32.xlu0 %v723
        %v745 = vpop.xlane.xlu0 %744
        %746 = vadd.xlane.f32.xlu0 %v724
        %v747 = vpop.xlane.xlu0 %746
        %748 = vadd.xlane.f32.xlu0 %v725
        %v749 = vpop.xlane.xlu0 %748
        %750 = vadd.xlane.f32.xlu0 %v726
        %v751 = vpop.xlane.xlu0 %750
        %752 = vadd.xlane.f32.xlu0 %v727
        %v753 = vpop.xlane.xlu0 %752
        %754 = vadd.xlane.f32.xlu0 %v728
        %v755 = vpop.xlane.xlu0 %754
        %756 = vadd.xlane.f32.xlu0 %v729
        %v757 = vpop.xlane.xlu0 %756
        %758 = vadd.xlane.f32.xlu0 %v730
        %v759 = vpop.xlane.xlu0 %758
        %760 = vadd.xlane.f32.xlu0 %v731
        %v761 = vpop.xlane.xlu0 %760
        %762 = vadd.xlane.f32.xlu0 %v732
        %v763 = vpop.xlane.xlu0 %762
        %764 = vadd.xlane.f32.xlu0 %v733
        %v765 = vpop.xlane.xlu0 %764
        %v766 = vmul.f32 %v687, 0.0078125
        %v767 = vmul.f32 %v689, 0.0078125
        %v768 = vmul.f32 %v691, 0.0078125
        %v769 = vmul.f32 %v693, 0.0078125
        %v770 = vmul.f32 %v695, 0.0078125
        %v771 = vmul.f32 %v697, 0.0078125
        %v772 = vmul.f32 %v699, 0.0078125
        %v773 = vmul.f32 %v701, 0.0078125
        %v774 = vmul.f32 %v703, 0.0078125
        %v775 = vmul.f32 %v705, 0.0078125
        %v776 = vmul.f32 %v707, 0.0078125
        %v777 = vmul.f32 %v709, 0.0078125
        %v778 = vmul.f32 %v711, 0.0078125
        %v779 = vmul.f32 %v713, 0.0078125
        %v780 = vmul.f32 %v715, 0.0078125
        %v781 = vmul.f32 %v717, 0.0078125
        %v782 = vmul.f32 %v735, 0.0078125
        %v783 = vmul.f32 %v737, 0.0078125
        %v784 = vmul.f32 %v739, 0.0078125
        %v785 = vmul.f32 %v741, 0.0078125
        %v786 = vmul.f32 %v743, 0.0078125
        %v787 = vmul.f32 %v745, 0.0078125
        %v788 = vmul.f32 %v747, 0.0078125
        %v789 = vmul.f32 %v749, 0.0078125
        %v790 = vmul.f32 %v751, 0.0078125
        %v791 = vmul.f32 %v753, 0.0078125
        %v792 = vmul.f32 %v755, 0.0078125
        %v793 = vmul.f32 %v757, 0.0078125
        %v794 = vmul.f32 %v759, 0.0078125
        %v795 = vmul.f32 %v761, 0.0078125
        %v796 = vmul.f32 %v763, 0.0078125
        %v797 = vmul.f32 %v765, 0.0078125
        %v798 = vmul.f32 %v766, %v766
        %v799 = vmul.f32 %v767, %v767
        %v800 = vmul.f32 %v768, %v768
        %v801 = vmul.f32 %v769, %v769
        %v802 = vmul.f32 %v770, %v770
        %v803 = vmul.f32 %v771, %v771
        %v804 = vmul.f32 %v772, %v772
        %v805 = vmul.f32 %v773, %v773
        %v806 = vmul.f32 %v774, %v774
        %v807 = vmul.f32 %v775, %v775
        %v808 = vmul.f32 %v776, %v776
        %v809 = vmul.f32 %v777, %v777
        %v810 = vmul.f32 %v778, %v778
        %v811 = vmul.f32 %v779, %v779
        %v812 = vmul.f32 %v780, %v780
        %v813 = vmul.f32 %v781, %v781
        %v814 = vsub.f32 %v782, %v798
        %v815 = vsub.f32 %v783, %v799
        %v816 = vsub.f32 %v784, %v800
        %v817 = vsub.f32 %v785, %v801
        %v818 = vsub.f32 %v786, %v802
        %v819 = vsub.f32 %v787, %v803
        %v820 = vsub.f32 %v788, %v804
        %v821 = vsub.f32 %v789, %v805
        %v822 = vsub.f32 %v790, %v806
        %v823 = vsub.f32 %v791, %v807
        %v824 = vsub.f32 %v792, %v808
        %v825 = vsub.f32 %v793, %v809
        %v826 = vsub.f32 %v794, %v810
        %v827 = vsub.f32 %v795, %v811
        %v828 = vsub.f32 %v796, %v812
        %v829 = vsub.f32 %v797, %v813
        %v830 = vsub.f32 %v622, %v766
        %v831 = vsub.f32 %v625, %v767
        %v832 = vsub.f32 %v630, %v768
        %v833 = vsub.f32 %v633, %v769
        %v834 = vsub.f32 %v638, %v770
        %v835 = vsub.f32 %v641, %v771
        %v836 = vsub.f32 %v646, %v772
        %v837 = vsub.f32 %v649, %v773
        %v838 = vsub.f32 %v654, %v774
        %v839 = vsub.f32 %v657, %v775
        %v840 = vsub.f32 %v662, %v776
        %v841 = vsub.f32 %v665, %v777
        %v842 = vsub.f32 %v670, %v778
        %v843 = vsub.f32 %v673, %v779
        %v844 = vsub.f32 %v678, %v780
        %v845 = vsub.f32 %v681, %v781
        %v846 = vadd.f32 %v814, 1e-05
        %v847 = vadd.f32 %v815, 1e-05
        %v848 = vadd.f32 %v816, 1e-05
        %v849 = vadd.f32 %v817, 1e-05
        %v850 = vadd.f32 %v818, 1e-05
        %v851 = vadd.f32 %v819, 1e-05
        %v852 = vadd.f32 %v820, 1e-05
        %v853 = vadd.f32 %v821, 1e-05
        %v854 = vadd.f32 %v822, 1e-05
        %v855 = vadd.f32 %v823, 1e-05
        %v856 = vadd.f32 %v824, 1e-05
        %v857 = vadd.f32 %v825, 1e-05
        %v858 = vadd.f32 %v826, 1e-05
        %v859 = vadd.f32 %v827, 1e-05
        %v860 = vadd.f32 %v828, 1e-05
        %v861 = vadd.f32 %v829, 1e-05
        %v862 = vrsqrt.pop %v846
        %v863 = vrsqrt.pop %v847
        %v864 = vrsqrt.pop %v848
        %v865 = vrsqrt.pop %v849
        %v866 = vrsqrt.pop %v850
        %v867 = vrsqrt.pop %v851
        %v868 = vrsqrt.pop %v852
        %v869 = vrsqrt.pop %v853
        %v870 = vrsqrt.pop %v854
        %v871 = vrsqrt.pop %v855
        %v872 = vrsqrt.pop %v856
        %v873 = vrsqrt.pop %v857
        %v874 = vrsqrt.pop %v858
        %v875 = vrsqrt.pop %v859
        %v876 = vrsqrt.pop %v860
        %v877 = vrsqrt.pop %v861
        %v878 = vmul.f32 %v830, %v862
        %v879 = vmul.f32 %v831, %v863
        %v880 = vmul.f32 %v832, %v864
        %v881 = vmul.f32 %v833, %v865
        %v882 = vmul.f32 %v834, %v866
        %v883 = vmul.f32 %v835, %v867
        %v884 = vmul.f32 %v836, %v868
        %v885 = vmul.f32 %v837, %v869
        %v886 = vmul.f32 %v838, %v870
        %v887 = vmul.f32 %v839, %v871
        %v888 = vmul.f32 %v840, %v872
        %v889 = vmul.f32 %v841, %v873
        %v890 = vmul.f32 %v842, %v874
        %v891 = vmul.f32 %v843, %v875
        %v892 = vmul.f32 %v844, %v876
        %v893 = vmul.f32 %v845, %v877
        %v895 = vlaneseq
        %v896 = vshrl.u32 %v895, 7
        %v897 = vsub.s32 0, %v896
        %v898 = vrot.slane %v684, %v897
        %v900 = vmul.f32 %v878, %v898
        %v901 = vmul.f32 %v879, %v898
        %v902 = vmul.f32 %v880, %v898
        %v903 = vmul.f32 %v881, %v898
        %v904 = vmul.f32 %v882, %v898
        %v905 = vmul.f32 %v883, %v898
        %v906 = vmul.f32 %v884, %v898
        %v907 = vmul.f32 %v885, %v898
        %v908 = vmul.f32 %v886, %v898
        %v909 = vmul.f32 %v887, %v898
        %v910 = vmul.f32 %v888, %v898
        %v911 = vmul.f32 %v889, %v898
        %v912 = vmul.f32 %v890, %v898
        %v913 = vmul.f32 %v891, %v898
        %v914 = vmul.f32 %v892, %v898
        %v915 = vmul.f32 %v893, %v898
        %v917 = vlaneseq
        %v918 = vshrl.u32 %v917, 7
        %v919 = vsub.s32 0, %v918
        %v920 = vrot.slane %v685, %v919
        %v922 = vadd.f32 %v900, %v920
        %v923 = vadd.f32 %v901, %v920
        %v924 = vadd.f32 %v902, %v920
        %v925 = vadd.f32 %v903, %v920
        %v926 = vadd.f32 %v904, %v920
        %v927 = vadd.f32 %v905, %v920
        %v928 = vadd.f32 %v906, %v920
        %v929 = vadd.f32 %v907, %v920
        %v930 = vadd.f32 %v908, %v920
        %v931 = vadd.f32 %v909, %v920
        %v932 = vadd.f32 %v910, %v920
        %v933 = vadd.f32 %v911, %v920
        %v934 = vadd.f32 %v912, %v920
        %v935 = vadd.f32 %v913, %v920
        %v936 = vadd.f32 %v914, %v920
        %v937 = vadd.f32 %v915, %v920
        %v938 = vmax.f32 %v922, 0.0
        %v939 = vmax.f32 %v923, 0.0
        %v940 = vmax.f32 %v924, 0.0
        %v941 = vmax.f32 %v925, 0.0
        %v942 = vmax.f32 %v926, 0.0
        %v943 = vmax.f32 %v927, 0.0
        %v944 = vmax.f32 %v928, 0.0
        %v945 = vmax.f32 %v929, 0.0
        %v946 = vmax.f32 %v930, 0.0
        %v947 = vmax.f32 %v931, 0.0
        %v948 = vmax.f32 %v932, 0.0
        %v949 = vmax.f32 %v933, 0.0
        %v950 = vmax.f32 %v934, 0.0
        %v951 = vmax.f32 %v935, 0.0
        %v952 = vmax.f32 %v936, 0.0
        %v953 = vmax.f32 %v937, 0.0
        %v954 = vpack.c.bf16 %v939, %v938
        %v955 = vpack.c.bf16 %v941, %v940
        %v956 = vpack.c.bf16 %v943, %v942
        %v957 = vpack.c.bf16 %v945, %v944
        %v958 = vpack.c.bf16 %v947, %v946
        %v959 = vpack.c.bf16 %v949, %v948
        %v960 = vpack.c.bf16 %v951, %v950
        %v961 = vpack.c.bf16 %v953, %v952
        %v962 = vld [vmem:[#allocation7] sm:$0xff]
        %v963 = vld [vmem:[#allocation7 + $0x8] sm:$0xff]
        %v964 = vld [vmem:[#allocation7 + $0x10] sm:$0xff]
        %v965 = vld [vmem:[#allocation7 + $0x18] sm:$0xff]
        %v966 = vld [vmem:[#allocation7 + $0x20] sm:$0xff]
        %v967 = vld [vmem:[#allocation7 + $0x28] sm:$0xff]
        %v968 = vld [vmem:[#allocation7 + $0x30] sm:$0xff]
        %v969 = vld [vmem:[#allocation7 + $0x38] sm:$0xff]
        %v970 = vld [vmem:[#allocation7 + $0x40] sm:$0xff]
        %v971 = vld [vmem:[#allocation7 + $0x48] sm:$0xff]
        %v972 = vld [vmem:[#allocation7 + $0x50] sm:$0xff]
        %v973 = vld [vmem:[#allocation7 + $0x58] sm:$0xff]
        %v974 = vld [vmem:[#allocation7 + $0x60] sm:$0xff]
        %v975 = vld [vmem:[#allocation7 + $0x68] sm:$0xff]
        %v976 = vld [vmem:[#allocation7 + $0x70] sm:$0xff]
        %v977 = vld [vmem:[#allocation7 + $0x78] sm:$0xff]
        %v978 = vld [vmem:[%s6] sm:$0x3]
        %v980 = vlaneseq
        %v981 = vshrl.u32 %v980, 7
        %v982 = vsub.s32 0, %v981
        %v983 = vrot.slane %v978, %v982
        %v984 = vlaneseq
        %v985 = vshrl.u32 %v984, 7
        %v986 = vsub.s32 1, %v985
        %v987 = vrot.slane %v978, %v986
        %v1006 = vunpack.c.l.b16 %v962
        %v1007 = vunpack.c.h.b16 %v962
        %v1008 = vunpack.c.l.b16 %v963
        %v1009 = vunpack.c.h.b16 %v963
        %v1010 = vunpack.c.l.b16 %v964
        %v1011 = vunpack.c.h.b16 %v964
        %v1012 = vunpack.c.l.b16 %v965
        %v1013 = vunpack.c.h.b16 %v965
        %v1014 = vunpack.c.l.b16 %v966
        %v1015 = vunpack.c.h.b16 %v966
        %v1016 = vunpack.c.l.b16 %v967
        %v1017 = vunpack.c.h.b16 %v967
        %v1018 = vunpack.c.l.b16 %v968
        %v1019 = vunpack.c.h.b16 %v968
        %v1020 = vunpack.c.l.b16 %v969
        %v1021 = vunpack.c.h.b16 %v969
        %v1022 = vunpack.c.l.b16 %v970
        %v1023 = vunpack.c.h.b16 %v970
        %v1024 = vunpack.c.l.b16 %v971
        %v1025 = vunpack.c.h.b16 %v971
        %v1026 = vunpack.c.l.b16 %v972
        %v1027 = vunpack.c.h.b16 %v972
        %v1028 = vunpack.c.l.b16 %v973
        %v1029 = vunpack.c.h.b16 %v973
        %v1030 = vunpack.c.l.b16 %v974
        %v1031 = vunpack.c.h.b16 %v974
        %v1032 = vunpack.c.l.b16 %v975
        %v1033 = vunpack.c.h.b16 %v975
        %v1034 = vunpack.c.l.b16 %v976
        %v1035 = vunpack.c.h.b16 %v976
        %v1036 = vunpack.c.l.b16 %v977
        %v1037 = vunpack.c.h.b16 %v977
        %v1038 = vpack.c.b16 %v1008, %v1006
        %v1039 = vpack.c.b16 %v1009, %v1007
        %v1040 = vpack.c.b16 %v1012, %v1010
        %v1041 = vpack.c.b16 %v1013, %v1011
        %v1042 = vpack.c.b16 %v1016, %v1014
        %v1043 = vpack.c.b16 %v1017, %v1015
        %v1044 = vpack.c.b16 %v1020, %v1018
        %v1045 = vpack.c.b16 %v1021, %v1019
        %v1046 = vpack.c.b16 %v1024, %v1022
        %v1047 = vpack.c.b16 %v1025, %v1023
        %v1048 = vpack.c.b16 %v1028, %v1026
        %v1049 = vpack.c.b16 %v1029, %v1027
        %v1050 = vpack.c.b16 %v1032, %v1030
        %v1051 = vpack.c.b16 %v1033, %v1031
        %v1052 = vpack.c.b16 %v1036, %v1034
        %v1053 = vpack.c.b16 %v1037, %v1035
        %1070 = vmatprep.subr.bf16.mxu0 %v1039
        %1071 = vmatpush1.bf16.msra.mxu0 %v1038
        %1072 = vmatprep.subr.bf16.mxu0 %v1041
        %1073 = vmatpush1.bf16.msra.mxu0 %v1040
        %1074 = vmatprep.subr.bf16.mxu0 %v1043
        %1075 = vmatpush1.bf16.msra.mxu0 %v1042
        %1076 = vmatprep.subr.bf16.mxu0 %v1045
        %1077 = vmatpush1.bf16.msra.mxu0 %v1044
        %1078 = vmatprep.subr.bf16.mxu0 %v1047
        %1079 = vmatpush1.bf16.msra.mxu0 %v1046
        %1080 = vmatprep.subr.bf16.mxu0 %v1049
        %1081 = vmatpush1.bf16.msra.mxu0 %v1048
        %1082 = vmatprep.subr.bf16.mxu0 %v1051
        %1083 = vmatpush1.bf16.msra.mxu0 %v1050
        %1084 = vmatprep.subr.bf16.mxu0 %v1053
        %1085 = vmatpush1.bf16.msra.mxu0 %v1052
        %1086 = vmatprep.subr.bf16.mxu0 0
        %1087 = vmatpush1.bf16.msra.mxu0 0
        %1088 = vmatprep.subr.bf16.mxu0 0
        %1089 = vmatpush1.bf16.msra.mxu0 0
        %1090 = vmatprep.subr.bf16.mxu0 0
        %1091 = vmatpush1.bf16.msra.mxu0 0
        %1092 = vmatprep.subr.bf16.mxu0 0
        %1093 = vmatpush1.bf16.msra.mxu0 0
        %1094 = vmatprep.subr.bf16.mxu0 0
        %1095 = vmatpush1.bf16.msra.mxu0 0
        %1096 = vmatprep.subr.bf16.mxu0 0
        %1097 = vmatpush1.bf16.msra.mxu0 0
        %1098 = vmatprep.subr.bf16.mxu0 0
        %1099 = vmatpush1.bf16.msra.mxu0 0
        %1100 = vmatprep.subr.bf16.mxu0 0
        %1101 = vmatpush1.bf16.msra.mxu0 0
        %1102 = vmatprep.mubr.bf16.mxu0 0
        %1103 = vmatmul.mubr.bf16.gmra.mrb[0].mxu0 %v954
        %v1104 = vpop.f32.mrb[0].mxu0
        %v1105 = vadd.f32 %v983, %v1104
        %v1106 = vpop.f32.mrb[0].mxu0
        %v1107 = vadd.f32 %v987, %v1106
        %v1108 = vpop.f32.mrb[0].mxu0
        %v1109 = vadd.f32 %v983, %v1108
        %v1110 = vpop.f32.mrb[0].mxu0
        %v1111 = vadd.f32 %v987, %v1110
        %1112 = vmatprep.mubr.bf16.mxu0 0
        %1113 = vmatmul.mubr.bf16.gmra.mrb[0].mxu0 %v955
        %v1114 = vpop.f32.mrb[0].mxu0
        %v1115 = vadd.f32 %v983, %v1114
        %v1116 = vpop.f32.mrb[0].mxu0
        %v1117 = vadd.f32 %v987, %v1116
        %v1118 = vpop.f32.mrb[0].mxu0
        %v1119 = vadd.f32 %v983, %v1118
        %v1120 = vpop.f32.mrb[0].mxu0
        %v1121 = vadd.f32 %v987, %v1120
        %1122 = vmatprep.mubr.bf16.mxu0 0
        %1123 = vmatmul.mubr.bf16.gmra.mrb[0].mxu0 %v956
        %v1124 = vpop.f32.mrb[0].mxu0
        %v1125 = vadd.f32 %v983, %v1124
        %v1126 = vpop.f32.mrb[0].mxu0
        %v1127 = vadd.f32 %v987, %v1126
        %v1128 = vpop.f32.mrb[0].mxu0
        %v1129 = vadd.f32 %v983, %v1128
        %v1130 = vpop.f32.mrb[0].mxu0
        %v1131 = vadd.f32 %v987, %v1130
        %1132 = vmatprep.mubr.bf16.mxu0 0
        %1133 = vmatmul.mubr.bf16.gmra.mrb[0].mxu0 %v957
        %v1134 = vpop.f32.mrb[0].mxu0
        %v1135 = vadd.f32 %v983, %v1134
        %v1136 = vpop.f32.mrb[0].mxu0
        %v1137 = vadd.f32 %v987, %v1136
        %v1138 = vpop.f32.mrb[0].mxu0
        %v1139 = vadd.f32 %v983, %v1138
        %v1140 = vpop.f32.mrb[0].mxu0
        %v1141 = vadd.f32 %v987, %v1140
        %1142 = vmatprep.mubr.bf16.mxu0 0
        %1143 = vmatmul.mubr.bf16.gmra.mrb[0].mxu0 %v958
        %v1144 = vpop.f32.mrb[0].mxu0
        %v1145 = vadd.f32 %v983, %v1144
        %v1146 = vpop.f32.mrb[0].mxu0
        %v1147 = vadd.f32 %v987, %v1146
        %v1148 = vpop.f32.mrb[0].mxu0
        %v1149 = vadd.f32 %v983, %v1148
        %v1150 = vpop.f32.mrb[0].mxu0
        %v1151 = vadd.f32 %v987, %v1150
        %1152 = vmatprep.mubr.bf16.mxu0 0
        %1153 = vmatmul.mubr.bf16.gmra.mrb[0].mxu0 %v959
        %v1154 = vpop.f32.mrb[0].mxu0
        %v1155 = vadd.f32 %v983, %v1154
        %v1156 = vpop.f32.mrb[0].mxu0
        %v1157 = vadd.f32 %v987, %v1156
        %v1158 = vpop.f32.mrb[0].mxu0
        %v1159 = vadd.f32 %v983, %v1158
        %v1160 = vpop.f32.mrb[0].mxu0
        %v1161 = vadd.f32 %v987, %v1160
        %1162 = vmatprep.mubr.bf16.mxu0 0
        %1163 = vmatmul.mubr.bf16.gmra.mrb[0].mxu0 %v960
        %v1164 = vpop.f32.mrb[0].mxu0
        %v1165 = vadd.f32 %v983, %v1164
        %v1166 = vpop.f32.mrb[0].mxu0
        %v1167 = vadd.f32 %v987, %v1166
        %v1168 = vpop.f32.mrb[0].mxu0
        %v1169 = vadd.f32 %v983, %v1168
        %v1170 = vpop.f32.mrb[0].mxu0
        %v1171 = vadd.f32 %v987, %v1170
        %1172 = vmatprep.mubr.bf16.mxu0 0
        %1173 = vmatmul.mubr.bf16.gmra.mrb[0].mxu0 %v961
        %v1174 = vpop.f32.mrb[0].mxu0
        %v1175 = vadd.f32 %v983, %v1174
        %v1176 = vpop.f32.mrb[0].mxu0
        %v1177 = vadd.f32 %v987, %v1176
        %v1178 = vpop.f32.mrb[0].mxu0
        %v1179 = vadd.f32 %v983, %v1178
        %v1180 = vpop.f32.mrb[0].mxu0
        %v1181 = vadd.f32 %v987, %v1180
        %1182 = vdwg.mxu0
        %v1183 = vld [vmem:[%s7] sm:$0x3]
        %v1184 = vld [vmem:[%s8] sm:$0x3]
        %v1185 = vadd.f32 %v1105, %v1107
        %1186 = vadd.xlane.f32.xlu0 %v1185
        %v1187 = vpop.xlane.xlu0 %1186
        %v1188 = vadd.f32 %v1109, %v1111
        %1189 = vadd.xlane.f32.xlu0 %v1188
        %v1190 = vpop.xlane.xlu0 %1189
        %v1191 = vadd.f32 %v1115, %v1117
        %1192 = vadd.xlane.f32.xlu0 %v1191
        %v1193 = vpop.xlane.xlu0 %1192
        %v1194 = vadd.f32 %v1119, %v1121
        %1195 = vadd.xlane.f32.xlu0 %v1194
        %v1196 = vpop.xlane.xlu0 %1195
        %v1197 = vadd.f32 %v1125, %v1127
        %1198 = vadd.xlane.f32.xlu0 %v1197
        %v1199 = vpop.xlane.xlu0 %1198
        %v1200 = vadd.f32 %v1129, %v1131
        %1201 = vadd.xlane.f32.xlu0 %v1200
        %v1202 = vpop.xlane.xlu0 %1201
        %v1203 = vadd.f32 %v1135, %v1137
        %1204 = vadd.xlane.f32.xlu0 %v1203
        %v1205 = vpop.xlane.xlu0 %1204
        %v1206 = vadd.f32 %v1139, %v1141
        %1207 = vadd.xlane.f32.xlu0 %v1206
        %v1208 = vpop.xlane.xlu0 %1207
        %v1209 = vadd.f32 %v1145, %v1147
        %1210 = vadd.xlane.f32.xlu0 %v1209
        %v1211 = vpop.xlane.xlu0 %1210
        %v1212 = vadd.f32 %v1149, %v1151
        %1213 = vadd.xlane.f32.xlu0 %v1212
        %v1214 = vpop.xlane.xlu0 %1213
        %v1215 = vadd.f32 %v1155, %v1157
        %1216 = vadd.xlane.f32.xlu0 %v1215
        %v1217 = vpop.xlane.xlu0 %1216
        %v1218 = vadd.f32 %v1159, %v1161
        %1219 = vadd.xlane.f32.xlu0 %v1218
        %v1220 = vpop.xlane.xlu0 %1219
        %v1221 = vadd.f32 %v1165, %v1167
        %1222 = vadd.xlane.f32.xlu0 %v1221
        %v1223 = vpop.xlane.xlu0 %1222
        %v1224 = vadd.f32 %v1169, %v1171
        %1225 = vadd.xlane.f32.xlu0 %v1224
        %v1226 = vpop.xlane.xlu0 %1225
        %v1227 = vadd.f32 %v1175, %v1177
        %1228 = vadd.xlane.f32.xlu0 %v1227
        %v1229 = vpop.xlane.xlu0 %1228
        %v1230 = vadd.f32 %v1179, %v1181
        %1231 = vadd.xlane.f32.xlu0 %v1230
        %v1232 = vpop.xlane.xlu0 %1231
        %v1233 = vmul.f32 %v1105, %v1105
        %v1234 = vmul.f32 %v1107, %v1107
        %v1235 = vmul.f32 %v1109, %v1109
        %v1236 = vmul.f32 %v1111, %v1111
        %v1237 = vmul.f32 %v1115, %v1115
        %v1238 = vmul.f32 %v1117, %v1117
        %v1239 = vmul.f32 %v1119, %v1119
        %v1240 = vmul.f32 %v1121, %v1121
        %v1241 = vmul.f32 %v1125, %v1125
        %v1242 = vmul.f32 %v1127, %v1127
        %v1243 = vmul.f32 %v1129, %v1129
        %v1244 = vmul.f32 %v1131, %v1131
        %v1245 = vmul.f32 %v1135, %v1135
        %v1246 = vmul.f32 %v1137, %v1137
        %v1247 = vmul.f32 %v1139, %v1139
        %v1248 = vmul.f32 %v1141, %v1141
        %v1249 = vmul.f32 %v1145, %v1145
        %v1250 = vmul.f32 %v1147, %v1147
        %v1251 = vmul.f32 %v1149, %v1149
        %v1252 = vmul.f32 %v1151, %v1151
        %v1253 = vmul.f32 %v1155, %v1155
        %v1254 = vmul.f32 %v1157, %v1157
        %v1255 = vmul.f32 %v1159, %v1159
        %v1256 = vmul.f32 %v1161, %v1161
        %v1257 = vmul.f32 %v1165, %v1165
        %v1258 = vmul.f32 %v1167, %v1167
        %v1259 = vmul.f32 %v1169, %v1169
        %v1260 = vmul.f32 %v1171, %v1171
        %v1261 = vmul.f32 %v1175, %v1175
        %v1262 = vmul.f32 %v1177, %v1177
        %v1263 = vmul.f32 %v1179, %v1179
        %v1264 = vmul.f32 %v1181, %v1181
        %v1265 = vadd.f32 %v1233, %v1234
        %1266 = vadd.xlane.f32.xlu0 %v1265
        %v1267 = vpop.xlane.xlu0 %1266
        %v1268 = vadd.f32 %v1235, %v1236
        %1269 = vadd.xlane.f32.xlu0 %v1268
        %v1270 = vpop.xlane.xlu0 %1269
        %v1271 = vadd.f32 %v1237, %v1238
        %1272 = vadd.xlane.f32.xlu0 %v1271
        %v1273 = vpop.xlane.xlu0 %1272
        %v1274 = vadd.f32 %v1239, %v1240
        %1275 = vadd.xlane.f32.xlu0 %v1274
        %v1276 = vpop.xlane.xlu0 %1275
        %v1277 = vadd.f32 %v1241, %v1242
        %1278 = vadd.xlane.f32.xlu0 %v1277
        %v1279 = vpop.xlane.xlu0 %1278
        %v1280 = vadd.f32 %v1243, %v1244
        %1281 = vadd.xlane.f32.xlu0 %v1280
        %v1282 = vpop.xlane.xlu0 %1281
        %v1283 = vadd.f32 %v1245, %v1246
        %1284 = vadd.xlane.f32.xlu0 %v1283
        %v1285 = vpop.xlane.xlu0 %1284
        %v1286 = vadd.f32 %v1247, %v1248
        %1287 = vadd.xlane.f32.xlu0 %v1286
        %v1288 = vpop.xlane.xlu0 %1287
        %v1289 = vadd.f32 %v1249, %v1250
        %1290 = vadd.xlane.f32.xlu0 %v1289
        %v1291 = vpop.xlane.xlu0 %1290
        %v1292 = vadd.f32 %v1251, %v1252
        %1293 = vadd.xlane.f32.xlu0 %v1292
        %v1294 = vpop.xlane.xlu0 %1293
        %v1295 = vadd.f32 %v1253, %v1254
        %1296 = vadd.xlane.f32.xlu0 %v1295
        %v1297 = vpop.xlane.xlu0 %1296
        %v1298 = vadd.f32 %v1255, %v1256
        %1299 = vadd.xlane.f32.xlu0 %v1298
        %v1300 = vpop.xlane.xlu0 %1299
        %v1301 = vadd.f32 %v1257, %v1258
        %1302 = vadd.xlane.f32.xlu0 %v1301
        %v1303 = vpop.xlane.xlu0 %1302
        %v1304 = vadd.f32 %v1259, %v1260
        %1305 = vadd.xlane.f32.xlu0 %v1304
        %v1306 = vpop.xlane.xlu0 %1305
        %v1307 = vadd.f32 %v1261, %v1262
        %1308 = vadd.xlane.f32.xlu0 %v1307
        %v1309 = vpop.xlane.xlu0 %1308
        %v1310 = vadd.f32 %v1263, %v1264
        %1311 = vadd.xlane.f32.xlu0 %v1310
        %v1312 = vpop.xlane.xlu0 %1311
        %v1313 = vmul.f32 %v1187, 0.00390625
        %v1314 = vmul.f32 %v1190, 0.00390625
        %v1315 = vmul.f32 %v1193, 0.00390625
        %v1316 = vmul.f32 %v1196, 0.00390625
        %v1317 = vmul.f32 %v1199, 0.00390625
        %v1318 = vmul.f32 %v1202, 0.00390625
        %v1319 = vmul.f32 %v1205, 0.00390625
        %v1320 = vmul.f32 %v1208, 0.00390625
        %v1321 = vmul.f32 %v1211, 0.00390625
        %v1322 = vmul.f32 %v1214, 0.00390625
        %v1323 = vmul.f32 %v1217, 0.00390625
        %v1324 = vmul.f32 %v1220, 0.00390625
        %v1325 = vmul.f32 %v1223, 0.00390625
        %v1326 = vmul.f32 %v1226, 0.00390625
        %v1327 = vmul.f32 %v1229, 0.00390625
        %v1328 = vmul.f32 %v1232, 0.00390625
        %v1329 = vmul.f32 %v1267, 0.00390625
        %v1330 = vmul.f32 %v1270, 0.00390625
        %v1331 = vmul.f32 %v1273, 0.00390625
        %v1332 = vmul.f32 %v1276, 0.00390625
        %v1333 = vmul.f32 %v1279, 0.00390625
        %v1334 = vmul.f32 %v1282, 0.00390625
        %v1335 = vmul.f32 %v1285, 0.00390625
        %v1336 = vmul.f32 %v1288, 0.00390625
        %v1337 = vmul.f32 %v1291, 0.00390625
        %v1338 = vmul.f32 %v1294, 0.00390625
        %v1339 = vmul.f32 %v1297, 0.00390625
        %v1340 = vmul.f32 %v1300, 0.00390625
        %v1341 = vmul.f32 %v1303, 0.00390625
        %v1342 = vmul.f32 %v1306, 0.00390625
        %v1343 = vmul.f32 %v1309, 0.00390625
        %v1344 = vmul.f32 %v1312, 0.00390625
        %v1345 = vmul.f32 %v1313, %v1313
        %v1346 = vmul.f32 %v1314, %v1314
        %v1347 = vmul.f32 %v1315, %v1315
        %v1348 = vmul.f32 %v1316, %v1316
        %v1349 = vmul.f32 %v1317, %v1317
        %v1350 = vmul.f32 %v1318, %v1318
        %v1351 = vmul.f32 %v1319, %v1319
        %v1352 = vmul.f32 %v1320, %v1320
        %v1353 = vmul.f32 %v1321, %v1321
        %v1354 = vmul.f32 %v1322, %v1322
        %v1355 = vmul.f32 %v1323, %v1323
        %v1356 = vmul.f32 %v1324, %v1324
        %v1357 = vmul.f32 %v1325, %v1325
        %v1358 = vmul.f32 %v1326, %v1326
        %v1359 = vmul.f32 %v1327, %v1327
        %v1360 = vmul.f32 %v1328, %v1328
        %v1361 = vsub.f32 %v1329, %v1345
        %v1362 = vsub.f32 %v1330, %v1346
        %v1363 = vsub.f32 %v1331, %v1347
        %v1364 = vsub.f32 %v1332, %v1348
        %v1365 = vsub.f32 %v1333, %v1349
        %v1366 = vsub.f32 %v1334, %v1350
        %v1367 = vsub.f32 %v1335, %v1351
        %v1368 = vsub.f32 %v1336, %v1352
        %v1369 = vsub.f32 %v1337, %v1353
        %v1370 = vsub.f32 %v1338, %v1354
        %v1371 = vsub.f32 %v1339, %v1355
        %v1372 = vsub.f32 %v1340, %v1356
        %v1373 = vsub.f32 %v1341, %v1357
        %v1374 = vsub.f32 %v1342, %v1358
        %v1375 = vsub.f32 %v1343, %v1359
        %v1376 = vsub.f32 %v1344, %v1360
        %v1377 = vsub.f32 %v1105, %v1313
        %v1378 = vsub.f32 %v1107, %v1313
        %v1379 = vsub.f32 %v1109, %v1314
        %v1380 = vsub.f32 %v1111, %v1314
        %v1381 = vsub.f32 %v1115, %v1315
        %v1382 = vsub.f32 %v1117, %v1315
        %v1383 = vsub.f32 %v1119, %v1316
        %v1384 = vsub.f32 %v1121, %v1316
        %v1385 = vsub.f32 %v1125, %v1317
        %v1386 = vsub.f32 %v1127, %v1317
        %v1387 = vsub.f32 %v1129, %v1318
        %v1388 = vsub.f32 %v1131, %v1318
        %v1389 = vsub.f32 %v1135, %v1319
        %v1390 = vsub.f32 %v1137, %v1319
        %v1391 = vsub.f32 %v1139, %v1320
        %v1392 = vsub.f32 %v1141, %v1320
        %v1393 = vsub.f32 %v1145, %v1321
        %v1394 = vsub.f32 %v1147, %v1321
        %v1395 = vsub.f32 %v1149, %v1322
        %v1396 = vsub.f32 %v1151, %v1322
        %v1397 = vsub.f32 %v1155, %v1323
        %v1398 = vsub.f32 %v1157, %v1323
        %v1399 = vsub.f32 %v1159, %v1324
        %v1400 = vsub.f32 %v1161, %v1324
        %v1401 = vsub.f32 %v1165, %v1325
        %v1402 = vsub.f32 %v1167, %v1325
        %v1403 = vsub.f32 %v1169, %v1326
        %v1404 = vsub.f32 %v1171, %v1326
        %v1405 = vsub.f32 %v1175, %v1327
        %v1406 = vsub.f32 %v1177, %v1327
        %v1407 = vsub.f32 %v1179, %v1328
        %v1408 = vsub.f32 %v1181, %v1328
        %v1409 = vadd.f32 %v1361, 1e-05
        %v1410 = vadd.f32 %v1362, 1e-05
        %v1411 = vadd.f32 %v1363, 1e-05
        %v1412 = vadd.f32 %v1364, 1e-05
        %v1413 = vadd.f32 %v1365, 1e-05
        %v1414 = vadd.f32 %v1366, 1e-05
        %v1415 = vadd.f32 %v1367, 1e-05
        %v1416 = vadd.f32 %v1368, 1e-05
        %v1417 = vadd.f32 %v1369, 1e-05
        %v1418 = vadd.f32 %v1370, 1e-05
        %v1419 = vadd.f32 %v1371, 1e-05
        %v1420 = vadd.f32 %v1372, 1e-05
        %v1421 = vadd.f32 %v1373, 1e-05
        %v1422 = vadd.f32 %v1374, 1e-05
        %v1423 = vadd.f32 %v1375, 1e-05
        %v1424 = vadd.f32 %v1376, 1e-05
        %v1425 = vrsqrt.pop %v1409
        %v1426 = vrsqrt.pop %v1410
        %v1427 = vrsqrt.pop %v1411
        %v1428 = vrsqrt.pop %v1412
        %v1429 = vrsqrt.pop %v1413
        %v1430 = vrsqrt.pop %v1414
        %v1431 = vrsqrt.pop %v1415
        %v1432 = vrsqrt.pop %v1416
        %v1433 = vrsqrt.pop %v1417
        %v1434 = vrsqrt.pop %v1418
        %v1435 = vrsqrt.pop %v1419
        %v1436 = vrsqrt.pop %v1420
        %v1437 = vrsqrt.pop %v1421
        %v1438 = vrsqrt.pop %v1422
        %v1439 = vrsqrt.pop %v1423
        %v1440 = vrsqrt.pop %v1424
        %v1441 = vmul.f32 %v1377, %v1425
        %v1442 = vmul.f32 %v1378, %v1425
        %v1443 = vmul.f32 %v1379, %v1426
        %v1444 = vmul.f32 %v1380, %v1426
        %v1445 = vmul.f32 %v1381, %v1427
        %v1446 = vmul.f32 %v1382, %v1427
        %v1447 = vmul.f32 %v1383, %v1428
        %v1448 = vmul.f32 %v1384, %v1428
        %v1449 = vmul.f32 %v1385, %v1429
        %v1450 = vmul.f32 %v1386, %v1429
        %v1451 = vmul.f32 %v1387, %v1430
        %v1452 = vmul.f32 %v1388, %v1430
        %v1453 = vmul.f32 %v1389, %v1431
        %v1454 = vmul.f32 %v1390, %v1431
        %v1455 = vmul.f32 %v1391, %v1432
        %v1456 = vmul.f32 %v1392, %v1432
        %v1457 = vmul.f32 %v1393, %v1433
        %v1458 = vmul.f32 %v1394, %v1433
        %v1459 = vmul.f32 %v1395, %v1434
        %v1460 = vmul.f32 %v1396, %v1434
        %v1461 = vmul.f32 %v1397, %v1435
        %v1462 = vmul.f32 %v1398, %v1435
        %v1463 = vmul.f32 %v1399, %v1436
        %v1464 = vmul.f32 %v1400, %v1436
        %v1465 = vmul.f32 %v1401, %v1437
        %v1466 = vmul.f32 %v1402, %v1437
        %v1467 = vmul.f32 %v1403, %v1438
        %v1468 = vmul.f32 %v1404, %v1438
        %v1469 = vmul.f32 %v1405, %v1439
        %v1470 = vmul.f32 %v1406, %v1439
        %v1471 = vmul.f32 %v1407, %v1440
        %v1472 = vmul.f32 %v1408, %v1440
        %v1474 = vlaneseq
        %v1475 = vshrl.u32 %v1474, 7
        %v1476 = vsub.s32 0, %v1475
        %v1477 = vrot.slane %v1183, %v1476
        %v1478 = vlaneseq
        %v1479 = vshrl.u32 %v1478, 7
        %v1480 = vsub.s32 1, %v1479
        %v1481 = vrot.slane %v1183, %v1480
        %v1484 = vmul.f32 %v1441, %v1477
        %v1485 = vmul.f32 %v1442, %v1481
        %v1486 = vmul.f32 %v1443, %v1477
        %v1487 = vmul.f32 %v1444, %v1481
        %v1488 = vmul.f32 %v1445, %v1477
        %v1489 = vmul.f32 %v1446, %v1481
        %v1490 = vmul.f32 %v1447, %v1477
        %v1491 = vmul.f32 %v1448, %v1481
        %v1492 = vmul.f32 %v1449, %v1477
        %v1493 = vmul.f32 %v1450, %v1481
        %v1494 = vmul.f32 %v1451, %v1477
        %v1495 = vmul.f32 %v1452, %v1481
        %v1496 = vmul.f32 %v1453, %v1477
        %v1497 = vmul.f32 %v1454, %v1481
        %v1498 = vmul.f32 %v1455, %v1477
        %v1499 = vmul.f32 %v1456, %v1481
        %v1500 = vmul.f32 %v1457, %v1477
        %v1501 = vmul.f32 %v1458, %v1481
        %v1502 = vmul.f32 %v1459, %v1477
        %v1503 = vmul.f32 %v1460, %v1481
        %v1504 = vmul.f32 %v1461, %v1477
        %v1505 = vmul.f32 %v1462, %v1481
        %v1506 = vmul.f32 %v1463, %v1477
        %v1507 = vmul.f32 %v1464, %v1481
        %v1508 = vmul.f32 %v1465, %v1477
        %v1509 = vmul.f32 %v1466, %v1481
        %v1510 = vmul.f32 %v1467, %v1477
        %v1511 = vmul.f32 %v1468, %v1481
        %v1512 = vmul.f32 %v1469, %v1477
        %v1513 = vmul.f32 %v1470, %v1481
        %v1514 = vmul.f32 %v1471, %v1477
        %v1515 = vmul.f32 %v1472, %v1481
        %v1517 = vlaneseq
        %v1518 = vshrl.u32 %v1517, 7
        %v1519 = vsub.s32 0, %v1518
        %v1520 = vrot.slane %v1184, %v1519
        %v1521 = vlaneseq
        %v1522 = vshrl.u32 %v1521, 7
        %v1523 = vsub.s32 1, %v1522
        %v1524 = vrot.slane %v1184, %v1523
        %v1527 = vadd.f32 %v1484, %v1520
        %v1528 = vadd.f32 %v1485, %v1524
        %v1529 = vadd.f32 %v1486, %v1520
        %v1530 = vadd.f32 %v1487, %v1524
        %v1531 = vadd.f32 %v1488, %v1520
        %v1532 = vadd.f32 %v1489, %v1524
        %v1533 = vadd.f32 %v1490, %v1520
        %v1534 = vadd.f32 %v1491, %v1524
        %v1535 = vadd.f32 %v1492, %v1520
        %v1536 = vadd.f32 %v1493, %v1524
        %v1537 = vadd.f32 %v1494, %v1520
        %v1538 = vadd.f32 %v1495, %v1524
        %v1539 = vadd.f32 %v1496, %v1520
        %v1540 = vadd.f32 %v1497, %v1524
        %v1541 = vadd.f32 %v1498, %v1520
        %v1542 = vadd.f32 %v1499, %v1524
        %v1543 = vadd.f32 %v1500, %v1520
        %v1544 = vadd.f32 %v1501, %v1524
        %v1545 = vadd.f32 %v1502, %v1520
        %v1546 = vadd.f32 %v1503, %v1524
        %v1547 = vadd.f32 %v1504, %v1520
        %v1548 = vadd.f32 %v1505, %v1524
        %v1549 = vadd.f32 %v1506, %v1520
        %v1550 = vadd.f32 %v1507, %v1524
        %v1551 = vadd.f32 %v1508, %v1520
        %v1552 = vadd.f32 %v1509, %v1524
        %v1553 = vadd.f32 %v1510, %v1520
        %v1554 = vadd.f32 %v1511, %v1524
        %v1555 = vadd.f32 %v1512, %v1520
        %v1556 = vadd.f32 %v1513, %v1524
        %v1557 = vadd.f32 %v1514, %v1520
        %v1558 = vadd.f32 %v1515, %v1524
        %v1559 = vmax.f32 %v1527, 0.0
        %v1560 = vmax.f32 %v1528, 0.0
        %v1561 = vmax.f32 %v1529, 0.0
        %v1562 = vmax.f32 %v1530, 0.0
        %v1563 = vmax.f32 %v1531, 0.0
        %v1564 = vmax.f32 %v1532, 0.0
        %v1565 = vmax.f32 %v1533, 0.0
        %v1566 = vmax.f32 %v1534, 0.0
        %v1567 = vmax.f32 %v1535, 0.0
        %v1568 = vmax.f32 %v1536, 0.0
        %v1569 = vmax.f32 %v1537, 0.0
        %v1570 = vmax.f32 %v1538, 0.0
        %v1571 = vmax.f32 %v1539, 0.0
        %v1572 = vmax.f32 %v1540, 0.0
        %v1573 = vmax.f32 %v1541, 0.0
        %v1574 = vmax.f32 %v1542, 0.0
        %v1575 = vmax.f32 %v1543, 0.0
        %v1576 = vmax.f32 %v1544, 0.0
        %v1577 = vmax.f32 %v1545, 0.0
        %v1578 = vmax.f32 %v1546, 0.0
        %v1579 = vmax.f32 %v1547, 0.0
        %v1580 = vmax.f32 %v1548, 0.0
        %v1581 = vmax.f32 %v1549, 0.0
        %v1582 = vmax.f32 %v1550, 0.0
        %v1583 = vmax.f32 %v1551, 0.0
        %v1584 = vmax.f32 %v1552, 0.0
        %v1585 = vmax.f32 %v1553, 0.0
        %v1586 = vmax.f32 %v1554, 0.0
        %v1587 = vmax.f32 %v1555, 0.0
        %v1588 = vmax.f32 %v1556, 0.0
        %v1589 = vmax.f32 %v1557, 0.0
        %v1590 = vmax.f32 %v1558, 0.0
        %v1591 = vpack.c.bf16 %v1561, %v1559
        %v1592 = vpack.c.bf16 %v1562, %v1560
        %v1593 = vpack.c.bf16 %v1565, %v1563
        %v1594 = vpack.c.bf16 %v1566, %v1564
        %v1595 = vpack.c.bf16 %v1569, %v1567
        %v1596 = vpack.c.bf16 %v1570, %v1568
        %v1597 = vpack.c.bf16 %v1573, %v1571
        %v1598 = vpack.c.bf16 %v1574, %v1572
        %v1599 = vpack.c.bf16 %v1577, %v1575
        %v1600 = vpack.c.bf16 %v1578, %v1576
        %v1601 = vpack.c.bf16 %v1581, %v1579
        %v1602 = vpack.c.bf16 %v1582, %v1580
        %v1603 = vpack.c.bf16 %v1585, %v1583
        %v1604 = vpack.c.bf16 %v1586, %v1584
        %v1605 = vpack.c.bf16 %v1589, %v1587
        %v1606 = vpack.c.bf16 %v1590, %v1588
        %v1607 = vld [vmem:[#allocation8] sm:$0xf]
        %v1608 = vld [vmem:[#allocation8 + $0x4] sm:$0xf]
        %v1609 = vld [vmem:[#allocation8 + $0x8] sm:$0xf]
        %v1610 = vld [vmem:[#allocation8 + $0xc] sm:$0xf]
        %v1611 = vld [vmem:[#allocation8 + $0x10] sm:$0xf]
        %v1612 = vld [vmem:[#allocation8 + $0x14] sm:$0xf]
        %v1613 = vld [vmem:[#allocation8 + $0x18] sm:$0xf]
        %v1614 = vld [vmem:[#allocation8 + $0x1c] sm:$0xf]
        %v1615 = vld [vmem:[#allocation8 + $0x20] sm:$0xf]
        %v1616 = vld [vmem:[#allocation8 + $0x24] sm:$0xf]
        %v1617 = vld [vmem:[#allocation8 + $0x28] sm:$0xf]
        %v1618 = vld [vmem:[#allocation8 + $0x2c] sm:$0xf]
        %v1619 = vld [vmem:[#allocation8 + $0x30] sm:$0xf]
        %v1620 = vld [vmem:[#allocation8 + $0x34] sm:$0xf]
        %v1621 = vld [vmem:[#allocation8 + $0x38] sm:$0xf]
        %v1622 = vld [vmem:[#allocation8 + $0x3c] sm:$0xf]
        %v1623 = vld [vmem:[#allocation8 + $0x40] sm:$0xf]
        %v1624 = vld [vmem:[#allocation8 + $0x44] sm:$0xf]
        %v1625 = vld [vmem:[#allocation8 + $0x48] sm:$0xf]
        %v1626 = vld [vmem:[#allocation8 + $0x4c] sm:$0xf]
        %v1627 = vld [vmem:[#allocation8 + $0x50] sm:$0xf]
        %v1628 = vld [vmem:[#allocation8 + $0x54] sm:$0xf]
        %v1629 = vld [vmem:[#allocation8 + $0x58] sm:$0xf]
        %v1630 = vld [vmem:[#allocation8 + $0x5c] sm:$0xf]
        %v1631 = vld [vmem:[#allocation8 + $0x60] sm:$0xf]
        %v1632 = vld [vmem:[#allocation8 + $0x64] sm:$0xf]
        %v1633 = vld [vmem:[#allocation8 + $0x68] sm:$0xf]
        %v1634 = vld [vmem:[#allocation8 + $0x6c] sm:$0xf]
        %v1635 = vld [vmem:[#allocation8 + $0x70] sm:$0xf]
        %v1636 = vld [vmem:[#allocation8 + $0x74] sm:$0xf]
        %v1637 = vld [vmem:[#allocation8 + $0x78] sm:$0xf]
        %v1638 = vld [vmem:[#allocation8 + $0x7c] sm:$0xf]
        %v1639 = vld [vmem:[%s10] sm:$0x1]
        %v1641 = vlaneseq
        %v1642 = vshrl.u32 %v1641, 7
        %v1643 = vsub.s32 0, %v1642
        %v1644 = vrot.slane %v1639, %v1643
        %v1678 = vunpack.c.l.b16 %v1607
        %v1679 = vunpack.c.l.b16 %v1608
        %v1680 = vunpack.c.l.b16 %v1609
        %v1681 = vunpack.c.l.b16 %v1610
        %v1682 = vunpack.c.l.b16 %v1611
        %v1683 = vunpack.c.l.b16 %v1612
        %v1684 = vunpack.c.l.b16 %v1613
        %v1685 = vunpack.c.l.b16 %v1614
        %v1686 = vunpack.c.l.b16 %v1615
        %v1687 = vunpack.c.l.b16 %v1616
        %v1688 = vunpack.c.l.b16 %v1617
        %v1689 = vunpack.c.l.b16 %v1618
        %v1690 = vunpack.c.l.b16 %v1619
        %v1691 = vunpack.c.l.b16 %v1620
        %v1692 = vunpack.c.l.b16 %v1621
        %v1693 = vunpack.c.l.b16 %v1622
        %v1694 = vunpack.c.l.b16 %v1623
        %v1695 = vunpack.c.l.b16 %v1624
        %v1696 = vunpack.c.l.b16 %v1625
        %v1697 = vunpack.c.l.b16 %v1626
        %v1698 = vunpack.c.l.b16 %v1627
        %v1699 = vunpack.c.l.b16 %v1628
        %v1700 = vunpack.c.l.b16 %v1629
        %v1701 = vunpack.c.l.b16 %v1630
        %v1702 = vunpack.c.l.b16 %v1631
        %v1703 = vunpack.c.l.b16 %v1632
        %v1704 = vunpack.c.l.b16 %v1633
        %v1705 = vunpack.c.l.b16 %v1634
        %v1706 = vunpack.c.l.b16 %v1635
        %v1707 = vunpack.c.l.b16 %v1636
        %v1708 = vunpack.c.l.b16 %v1637
        %v1709 = vunpack.c.l.b16 %v1638
        %v1710 = vpack.c.b16 %v1679, %v1678
        %v1711 = vpack.c.b16 %v1681, %v1680
        %v1712 = vpack.c.b16 %v1683, %v1682
        %v1713 = vpack.c.b16 %v1685, %v1684
        %v1714 = vpack.c.b16 %v1687, %v1686
        %v1715 = vpack.c.b16 %v1689, %v1688
        %v1716 = vpack.c.b16 %v1691, %v1690
        %v1717 = vpack.c.b16 %v1693, %v1692
        %v1718 = vpack.c.b16 %v1695, %v1694
        %v1719 = vpack.c.b16 %v1697, %v1696
        %v1720 = vpack.c.b16 %v1699, %v1698
        %v1721 = vpack.c.b16 %v1701, %v1700
        %v1722 = vpack.c.b16 %v1703, %v1702
        %v1723 = vpack.c.b16 %v1705, %v1704
        %v1724 = vpack.c.b16 %v1707, %v1706
        %v1725 = vpack.c.b16 %v1709, %v1708
        %1742 = vmatprep.subr.bf16.mxu0 0
        %1743 = vmatpush1.bf16.msra.mxu0 %v1710
        %1744 = vmatprep.subr.bf16.mxu0 0
        %1745 = vmatpush1.bf16.msra.mxu0 %v1711
        %1746 = vmatprep.subr.bf16.mxu0 0
        %1747 = vmatpush1.bf16.msra.mxu0 %v1712
        %1748 = vmatprep.subr.bf16.mxu0 0
        %1749 = vmatpush1.bf16.msra.mxu0 %v1713
        %1750 = vmatprep.subr.bf16.mxu0 0
        %1751 = vmatpush1.bf16.msra.mxu0 %v1714
        %1752 = vmatprep.subr.bf16.mxu0 0
        %1753 = vmatpush1.bf16.msra.mxu0 %v1715
        %1754 = vmatprep.subr.bf16.mxu0 0
        %1755 = vmatpush1.bf16.msra.mxu0 %v1716
        %1756 = vmatprep.subr.bf16.mxu0 0
        %1757 = vmatpush1.bf16.msra.mxu0 %v1717
        %1758 = vmatprep.subr.bf16.mxu0 0
        %1759 = vmatpush1.bf16.msra.mxu0 %v1718
        %1760 = vmatprep.subr.bf16.mxu0 0
        %1761 = vmatpush1.bf16.msra.mxu0 %v1719
        %1762 = vmatprep.subr.bf16.mxu0 0
        %1763 = vmatpush1.bf16.msra.mxu0 %v1720
        %1764 = vmatprep.subr.bf16.mxu0 0
        %1765 = vmatpush1.bf16.msra.mxu0 %v1721
        %1766 = vmatprep.subr.bf16.mxu0 0
        %1767 = vmatpush1.bf16.msra.mxu0 %v1722
        %1768 = vmatprep.subr.bf16.mxu0 0
        %1769 = vmatpush1.bf16.msra.mxu0 %v1723
        %1770 = vmatprep.subr.bf16.mxu0 0
        %1771 = vmatpush1.bf16.msra.mxu0 %v1724
        %1772 = vmatprep.subr.bf16.mxu0 0
        %1773 = vmatpush1.bf16.msra.mxu0 %v1725
        %1774 = vmatprep.mubr.bf16.mxu0 %v1592
        %1775 = vmatmul.mubr.bf16.gmra.mrb[0].mxu0 %v1591
        %v1776 = vpop.f32.mrb[0].mxu0
        %v1777 = vadd.f32 %v1644, %v1776
        %v1778 = vpop.f32.mrb[0].mxu0
        %v1779 = vpop.f32.mrb[0].mxu0
        %v1780 = vadd.f32 %v1644, %v1779
        %v1781 = vpop.f32.mrb[0].mxu0
        %1782 = vmatprep.mubr.bf16.mxu0 %v1594
        %1783 = vmatmul.mubr.bf16.gmra.mrb[0].mxu0 %v1593
        %v1784 = vpop.f32.mrb[0].mxu0
        %v1785 = vadd.f32 %v1644, %v1784
        %v1786 = vpop.f32.mrb[0].mxu0
        %v1787 = vpop.f32.mrb[0].mxu0
        %v1788 = vadd.f32 %v1644, %v1787
        %v1789 = vpop.f32.mrb[0].mxu0
        %1790 = vmatprep.mubr.bf16.mxu0 %v1596
        %1791 = vmatmul.mubr.bf16.gmra.mrb[0].mxu0 %v1595
        %v1792 = vpop.f32.mrb[0].mxu0
        %v1793 = vadd.f32 %v1644, %v1792
        %v1794 = vpop.f32.mrb[0].mxu0
        %v1795 = vpop.f32.mrb[0].mxu0
        %v1796 = vadd.f32 %v1644, %v1795
        %v1797 = vpop.f32.mrb[0].mxu0
        %1798 = vmatprep.mubr.bf16.mxu0 %v1598
        %1799 = vmatmul.mubr.bf16.gmra.mrb[0].mxu0 %v1597
        %v1800 = vpop.f32.mrb[0].mxu0
        %v1801 = vadd.f32 %v1644, %v1800
        %v1802 = vpop.f32.mrb[0].mxu0
        %v1803 = vpop.f32.mrb[0].mxu0
        %v1804 = vadd.f32 %v1644, %v1803
        %v1805 = vpop.f32.mrb[0].mxu0
        %1806 = vmatprep.mubr.bf16.mxu0 %v1600
        %1807 = vmatmul.mubr.bf16.gmra.mrb[0].mxu0 %v1599
        %v1808 = vpop.f32.mrb[0].mxu0
        %v1809 = vadd.f32 %v1644, %v1808
        %v1810 = vpop.f32.mrb[0].mxu0
        %v1811 = vpop.f32.mrb[0].mxu0
        %v1812 = vadd.f32 %v1644, %v1811
        %v1813 = vpop.f32.mrb[0].mxu0
        %1814 = vmatprep.mubr.bf16.mxu0 %v1602
        %1815 = vmatmul.mubr.bf16.gmra.mrb[0].mxu0 %v1601
        %v1816 = vpop.f32.mrb[0].mxu0
        %v1817 = vadd.f32 %v1644, %v1816
        %v1818 = vpop.f32.mrb[0].mxu0
        %v1819 = vpop.f32.mrb[0].mxu0
        %v1820 = vadd.f32 %v1644, %v1819
        %v1821 = vpop.f32.mrb[0].mxu0
        %1822 = vmatprep.mubr.bf16.mxu0 %v1604
        %1823 = vmatmul.mubr.bf16.gmra.mrb[0].mxu0 %v1603
        %v1824 = vpop.f32.mrb[0].mxu0
        %v1825 = vadd.f32 %v1644, %v1824
        %v1826 = vpop.f32.mrb[0].mxu0
        %v1827 = vpop.f32.mrb[0].mxu0
        %v1828 = vadd.f32 %v1644, %v1827
        %v1829 = vpop.f32.mrb[0].mxu0
        %1830 = vmatprep.mubr.bf16.mxu0 %v1606
        %1831 = vmatmul.mubr.bf16.gmra.mrb[0].mxu0 %v1605
        %v1832 = vpop.f32.mrb[0].mxu0
        %v1833 = vadd.f32 %v1644, %v1832
        %v1834 = vpop.f32.mrb[0].mxu0
        %v1835 = vpop.f32.mrb[0].mxu0
        %v1836 = vadd.f32 %v1644, %v1835
        %v1837 = vpop.f32.mrb[0].mxu0
        %1838 = vdwg.mxu0
        %1839 = vst [vmem:[%s448] sm:$0xff] %v1777
        %1840 = vst [vmem:[%s448 + $0x8] sm:$0xff] %v1780
        %1841 = vst [vmem:[%s448 + $0x10] sm:$0xff] %v1785
        %1842 = vst [vmem:[%s448 + $0x18] sm:$0xff] %v1788
        %1843 = vst [vmem:[%s448 + $0x20] sm:$0xff] %v1793
        %1844 = vst [vmem:[%s448 + $0x28] sm:$0xff] %v1796
        %1845 = vst [vmem:[%s448 + $0x30] sm:$0xff] %v1801
        %1846 = vst [vmem:[%s448 + $0x38] sm:$0xff] %v1804
        %1847 = vst [vmem:[%s448 + $0x40] sm:$0xff] %v1809
        %1848 = vst [vmem:[%s448 + $0x48] sm:$0xff] %v1812
        %1849 = vst [vmem:[%s448 + $0x50] sm:$0xff] %v1817
        %1850 = vst [vmem:[%s448 + $0x58] sm:$0xff] %v1820
        %1851 = vst [vmem:[%s448 + $0x60] sm:$0xff] %v1825
        %1852 = vst [vmem:[%s448 + $0x68] sm:$0xff] %v1828
        %1853 = vst [vmem:[%s448 + $0x70] sm:$0xff] %v1833
        %1854 = vst [vmem:[%s448 + $0x78] sm:$0xff] %v1836
        %s1855 = sand.u32 %s274, 1
        %s1856 = scalar_lea.sflag [#allocation4], %s1855
        %s1857 = sand.u32 %s274, 1
        %s1858 = smul.addr %s1857, 128
        %s1859 = scalar_lea.vmem [#allocation10], %s1858
        // Predicated region
        $region81: #{tpu_custom_call.1} parent=63 // pred_check
          %p1860 = pneg %p284
        $region82: #{tpu_custom_call.1} parent=63 // pred_check_branch
          %1862 = sbr.rel (%p1860) target = $region84
        $region83: #{tpu_custom_call.1} parent=63 // pred_region
          %s1863 = smul.u32 16, %s30
          %s1865 = ssub.s32 2048, 2048
          %1866 = vsyncadd %s1856, %s1865
          %s1867 = smul.addr %s1863, 128
          %s1868 = scalar_lea.hbm %s11, %s1867
          %s1869 = sshll.u32 %s1859, 4
          %s1870 = int_to_ptr.vmem [resolvable:$true] %s1869
          %1875 = dma.vmem_to_hbm [thread:$0]  %s1870, 2048, %s1868, %s1856, 128, 128, 8
        $region84: #{tpu_custom_call.1} parent=63 // pred_fallthru
          _
      $region64: #{tpu_custom_call.1} parent=5 // pred_fallthru
        _
      %p1876 = scmp.le.s32.totalorder 2, %s25
      // Predicated region
      $region85: #{tpu_custom_call.1} parent=5 // pred_check
        %p1877 = pneg %p1876
      $region86: #{tpu_custom_call.1} parent=5 // pred_check_branch
        %1879 = sbr.rel (%p1877) target = $region88
      $region87: #{tpu_custom_call.1} parent=5 // pred_region
        %s1880 = ssub.s32 %s25, 2
        // Predicated region
        $region89: #{tpu_custom_call.1} parent=87 // pred_check
          %p1881 = pneg %p290
        $region90: #{tpu_custom_call.1} parent=87 // pred_check_branch
          %1883 = sbr.rel (%p1881) target = $region92
        $region91: #{tpu_custom_call.1} parent=87 // pred_region
          %s1884 = sand.u32 %s275, 1
          %s1885 = scalar_lea.sflag [#allocation4], %s1884
          %s1886 = sand.u32 %s275, 1
          %s1887 = smul.addr %s1886, 128
          %s1888 = scalar_lea.vmem [#allocation10], %s1887
          %1889 = dma.done %s1885, 2048
        $region92: #{tpu_custom_call.1} parent=87 // pred_fallthru
          _
      $region88: #{tpu_custom_call.1} parent=5 // pred_fallthru
        _
    $region6: #{tpu_custom_call.1} parent=1 // loop_footer
      %s29 = sadd.s32 1, %s25
    $region7: #{tpu_custom_call.1} parent=1 // loop_footer_branch
      %24 = sbr.rel target = $region3
    $region8: #{tpu_custom_call.1} parent=1 // loop_exit
      _
    %1890 = vsyncpa [#allocation3], 1
    %s1891 = scalar_lea.sflag [#allocation3], 1
    %1892 = vsyncpa %s1891, 1
    %1893 = vsyncpa [#allocation6], 1
    %1894 = vsyncpa [#allocation9], 1
    %1895 = vsyncpa [#allocation4], 1
    %s1896 = scalar_lea.sflag [#allocation4], 1
    %1897 = vsyncpa %s1896, 1

</llo_original>
